<compile_context>
chip_gen: v5e
topology: v5e:2x2
jax: 0.10.0
libtpu: 0.0.40
codegen_flags: <defaults>
</compile_context>

<pallas_src>
import numpy as np

import jax
import jax.numpy as jnp
from jax.experimental import pallas as pl
from jax.experimental.pallas import tpu as pltpu


_INV_SQRT2 = 0.7071067811865476


def _erf_poly(x):
    """Abramowitz & Stegun 7.1.26 erf approximation (max abs err ~1.5e-7)."""
    a1 = 0.254829592
    a2 = -0.284496736
    a3 = 1.421413741
    a4 = -1.453152027
    a5 = 1.061405429
    p = 0.3275911
    s = jnp.where(x >= 0.0, 1.0, -1.0)
    ax = jnp.abs(x)
    # Divide goes to the EUP via approx reciprocal (error ~1e-4 rel, far inside
    # the bf16 error budget) instead of burning VALU slots.
    t = pl.reciprocal(1.0 + p * ax, approx=True)
    poly = ((((a5 * t + a4) * t + a3) * t + a2) * t + a1) * t
    return s * (1.0 - poly * jnp.exp(-ax * ax))


def _gelu_exact(x):
    """GELU (erf form), matching torch.nn.GELU(approximate='none')."""
    return 0.5 * x * (1.0 + _erf_poly(x * _INV_SQRT2))


def _round_up(v, m):
    return -(-v // m) * m


# ---------------------------------------------------------------------------
# Kernel: one row tile per grid step, whole MLP fused.
# ---------------------------------------------------------------------------
def _mlp_kernel(x_ref, w1_ref, b1_ref, w2_ref, b2_ref, o_ref):
    # fc1 on the MXU: bf16 inputs, f32 accumulation.
    h = jnp.dot(x_ref[...], w1_ref[...], preferred_element_type=jnp.float32)
    h = h + b1_ref[...]                       # bias + GELU in f32
    h = _gelu_exact(h)
    # dropout(p=0.0) is the identity -> omitted.
    # fc2 on the MXU: activations cast back to the MXU input dtype.
    y = jnp.dot(h.astype(w2_ref.dtype), w2_ref[...],
                preferred_element_type=jnp.float32)
    y = y + b2_ref[...]
    o_ref[...] = y.astype(o_ref.dtype)        # writeback in the input dtype


# ---------------------------------------------------------------------------
# Wrapper: flatten leading dims, tile rows, pallas_call.
# ---------------------------------------------------------------------------
def mlp_forward(x, params, *, block_rows=256, compute_dtype=jnp.bfloat16):
    """x: (..., in_features) -> (..., out_features), in x.dtype."""
    w1, b1, w2, b2 = params['w1'], params['b1'], params['w2'], params['b2']

    orig_shape = x.shape
    cin = orig_shape[-1]
    hidden = w1.shape[1]
    cout = w2.shape[1]
    assert w1.shape[0] == cin and w2.shape[0] == hidden
    assert b1.shape == (hidden,) and b2.shape == (cout,)

    out_dtype = x.dtype
    mxu_dtype = np.dtype(compute_dtype) if compute_dtype is not None else np.dtype(x.dtype)

    x2 = x.reshape(-1, cin)
    if x2.dtype != mxu_dtype:
        x2 = x2.astype(mxu_dtype)             # bf16 MXU inputs, halved DMA bytes
    w1c = w1.astype(mxu_dtype)
    w2c = w2.astype(mxu_dtype)
    b1c = b1.reshape(1, hidden).astype(jnp.float32)   # biases stay f32 (tiny)
    b2c = b2.reshape(1, cout).astype(jnp.float32)

    m = x2.shape[0]
    # Row tile: as big as block_rows (MXU fill, per-step overhead amortized),
    # but keep >= 2 grid steps when there are enough rows so the "parallel"
    # axis shards across v7x's two TensorCores.  tm is a multiple of 8 or == m.
    if m <= 16:
        tm = m
    else:
        tm = min(block_rows, _round_up(-(-m // 2), 8))
    grid = (pl.cdiv(m, tm),)   # ragged tail handled by Pallas (masked stores)

    # Raise the scoped VMEM limit only if the default (32 MiB) would not cover
    # the footprint; cap at 64 MiB so the same code still fits v7x's VMEM.
    w_bytes = (cin * hidden + hidden * cout) * mxu_dtype.itemsize
    b_bytes = (hidden + cout) * 4
    io_bytes = (2 * tm * cin * mxu_dtype.itemsize
                + 2 * tm * cout * np.dtype(out_dtype).itemsize)
    act_bytes = tm * (hidden + cout) * 4
    est_vmem = w_bytes + b_bytes + io_bytes + act_bytes
    vmem_limit = None
    if est_vmem > (28 << 20):
        vmem_limit = int(min(_round_up(2 * est_vmem, 1 << 20), 64 << 20))

    def call(single_buffer_weights):
        # Constant-index weight/bias blocks are only fetched once; a single
        # VMEM buffer each halves their footprint at real MLP widths.
        wkw = {"pipeline_mode": pl.Buffered(1)} if single_buffer_weights else {}
        in_specs = [
            pl.BlockSpec((tm, cin), lambda i: (i, 0)),
            pl.BlockSpec((cin, hidden), lambda i: (0, 0), **wkw),
            pl.BlockSpec((1, hidden), lambda i: (0, 0), **wkw),
            pl.BlockSpec((hidden, cout), lambda i: (0, 0), **wkw),
            pl.BlockSpec((1, cout), lambda i: (0, 0), **wkw),
        ]
        return pl.pallas_call(
            _mlp_kernel,
            out_shape=jax.ShapeDtypeStruct((m, cout), out_dtype),
            grid=grid,
            in_specs=in_specs,
            out_specs=pl.BlockSpec((tm, cout), lambda i: (i, 0)),
            compiler_params=pltpu.CompilerParams(
                dimension_semantics=("parallel",),
                vmem_limit_bytes=vmem_limit),
        )(x2, w1c, b1c, w2c, b2c)

    try:
        out = call(single_buffer_weights=True)
    except Exception:  # pragma: no cover - jaxlib without BlockSpec pipeline_mode
        out = call(single_buffer_weights=False)

    return out.reshape(*orig_shape[:-1], cout)


# ---------------------------------------------------------------------------
# Pure-JAX reference (mirrors the PyTorch forward) for validation.
# ---------------------------------------------------------------------------
def mlp_reference(x, params):
    h = x @ params['w1'] + params['b1']
    h = jax.nn.gelu(h, approximate=False)     # torch.nn.GELU default (exact erf)
    y = h @ params['w2'] + params['b2']
    return y


# ---------------------------------------------------------------------------
if __name__ == "__main__":
    batch, seq = 2, 64
    in_features, hidden_features, out_features = 128, 256, 128

    key = jax.random.PRNGKey(0)
    k_x, k_w1, k_b1, k_w2, k_b2 = jax.random.split(key, 5)
    params = {
        'w1': 0.05 * jax.random.normal(k_w1, (in_features, hidden_features), jnp.float32),
        'b1': 0.05 * jax.random.normal(k_b1, (hidden_features,), jnp.float32),
        'w2': 0.05 * jax.random.normal(k_w2, (hidden_features, out_features), jnp.float32),
        'b2': 0.05 * jax.random.normal(k_b2, (out_features,), jnp.float32),
    }
    x = jax.random.normal(k_x, (batch, seq, in_features), jnp.float32)

    # Flattened m = 128 rows -> tm = 64, grid = (2,): both v7x TensorCores get
    # a step; at larger m the tile grows to 256 rows automatically.
    out = mlp_forward(x, params)
    out = jax.block_until_ready(out)

    ref = mlp_reference(x, params)
    assert out.shape == (batch, seq, out_features)
    assert out.dtype == x.dtype
    # bf16 MXU inputs -> quantization-level deviation vs the f32 reference.
    max_err = float(jnp.max(jnp.abs(out.astype(jnp.float32) - ref)))
    assert jnp.allclose(out.astype(jnp.float32), ref, atol=3e-2, rtol=3e-2), max_err

    print("KERNEL_OK")
</pallas_src>

<mosaic_0001>
module attributes {stable_mosaic.version = 11 : i64} {
  func.func @_mlp_kernel(%arg0: i32, %arg1: memref<64x128xbf16, #tpu.memory_space<vmem>>, %arg2: memref<128x256xbf16, #tpu.memory_space<vmem>>, %arg3: memref<1x256xf32, #tpu.memory_space<vmem>>, %arg4: memref<256x128xbf16, #tpu.memory_space<vmem>>, %arg5: memref<1x128xf32, #tpu.memory_space<vmem>>, %arg6: memref<64x128xf32, #tpu.memory_space<vmem>>) attributes {dimension_semantics = [#tpu.dimension_semantics<parallel>], iteration_bounds = array<i64: 2>, scalar_prefetch = 0 : i64, scratch_operands = 0 : i64, tpu.core_type = #tpu.core_type<tc>, window_params = [{transform_indices = @transform_0, window_bounds = array<i64: 64, 128>}, {pipeline_mode = #tpu.pipeline_mode<synchronous>, transform_indices = @transform_1, window_bounds = array<i64: 128, 256>}, {pipeline_mode = #tpu.pipeline_mode<synchronous>, transform_indices = @transform_2, window_bounds = array<i64: 1, 256>}, {pipeline_mode = #tpu.pipeline_mode<synchronous>, transform_indices = @transform_3, window_bounds = array<i64: 256, 128>}, {pipeline_mode = #tpu.pipeline_mode<synchronous>, transform_indices = @transform_4, window_bounds = array<i64: 1, 128>}, {transform_indices = @transform_5, window_bounds = array<i64: 64, 128>}]} {
    %c0 = arith.constant 0 : index
    %c0_0 = arith.constant 0 : index
    %0 = vector.load %arg1[%c0, %c0_0] : memref<64x128xbf16, #tpu.memory_space<vmem>>, vector<64x128xbf16>
    %c0_1 = arith.constant 0 : index
    %c0_2 = arith.constant 0 : index
    %1 = vector.load %arg2[%c0_1, %c0_2] : memref<128x256xbf16, #tpu.memory_space<vmem>>, vector<128x256xbf16>
    %cst = arith.constant dense<0.000000e+00> : vector<64x256xf32>
    %2 = tpu.matmul %0, %1, %cst {dimension_numbers = #tpu.dot_dimension_numbers<[1], [0], [0], [1], [0, 0, 1, 1], [], []>} : vector<64x128xbf16>, vector<128x256xbf16>, vector<64x256xf32> -> vector<64x256xf32>
    %c0_3 = arith.constant 0 : index
    %c0_4 = arith.constant 0 : index
    %3 = vector.load %arg3[%c0_3, %c0_4] : memref<1x256xf32, #tpu.memory_space<vmem>>, vector<1x256xf32>
    %4 = vector.broadcast %3 : vector<1x256xf32> to vector<64x256xf32>
    %5 = arith.addf %2, %4 : vector<64x256xf32>
    %cst_5 = arith.constant 5.000000e-01 : f32
    %6 = vector.broadcast %cst_5 : f32 to vector<64x256xf32>
    %7 = arith.mulf %6, %5 : vector<64x256xf32>
    %cst_6 = arith.constant 0.707106769 : f32
    %8 = vector.broadcast %cst_6 : f32 to vector<64x256xf32>
    %9 = arith.mulf %5, %8 : vector<64x256xf32>
    %cst_7 = arith.constant 0.000000e+00 : f32
    %10 = vector.broadcast %cst_7 : f32 to vector<64x256xf32>
    %11 = arith.cmpf oge, %9, %10 : vector<64x256xf32>
    %cst_8 = arith.constant 1.000000e+00 : f32
    %cst_9 = arith.constant -1.000000e+00 : f32
    %12 = vector.broadcast %cst_8 : f32 to vector<64x256xf32>
    %13 = vector.broadcast %cst_9 : f32 to vector<64x256xf32>
    %14 = arith.select %11, %12, %13 : vector<64x256xi1>, vector<64x256xf32>
    %15 = math.absf %9 : vector<64x256xf32>
    %cst_10 = arith.constant 0.327591091 : f32
    %16 = vector.broadcast %cst_10 : f32 to vector<64x256xf32>
    %17 = arith.mulf %16, %15 : vector<64x256xf32>
    %cst_11 = arith.constant 1.000000e+00 : f32
    %18 = vector.broadcast %cst_11 : f32 to vector<64x256xf32>
    %19 = arith.addf %18, %17 : vector<64x256xf32>
    %20 = tpu.reciprocal %19 {approx = true} : vector<64x256xf32> -> vector<64x256xf32>
    %cst_12 = arith.constant 1.06140542 : f32
    %21 = vector.broadcast %cst_12 : f32 to vector<64x256xf32>
    %22 = arith.mulf %21, %20 : vector<64x256xf32>
    %cst_13 = arith.constant -1.45315206 : f32
    %23 = vector.broadcast %cst_13 : f32 to vector<64x256xf32>
    %24 = arith.addf %22, %23 : vector<64x256xf32>
    %25 = arith.mulf %24, %20 : vector<64x256xf32>
    %cst_14 = arith.constant 1.42141378 : f32
    %26 = vector.broadcast %cst_14 : f32 to vector<64x256xf32>
    %27 = arith.addf %25, %26 : vector<64x256xf32>
    %28 = arith.mulf %27, %20 : vector<64x256xf32>
    %cst_15 = arith.constant -0.284496725 : f32
    %29 = vector.broadcast %cst_15 : f32 to vector<64x256xf32>
    %30 = arith.addf %28, %29 : vector<64x256xf32>
    %31 = arith.mulf %30, %20 : vector<64x256xf32>
    %cst_16 = arith.constant 0.254829586 : f32
    %32 = vector.broadcast %cst_16 : f32 to vector<64x256xf32>
    %33 = arith.addf %31, %32 : vector<64x256xf32>
    %34 = arith.mulf %33, %20 : vector<64x256xf32>
    %cst_17 = arith.constant 0.000000e+00 : f32
    %35 = vector.broadcast %cst_17 : f32 to vector<64x256xf32>
    %36 = arith.subf %35, %15 : vector<64x256xf32>
    %37 = arith.mulf %36, %15 : vector<64x256xf32>
    %38 = math.exp %37 : vector<64x256xf32>
    %39 = arith.mulf %34, %38 : vector<64x256xf32>
    %cst_18 = arith.constant 1.000000e+00 : f32
    %40 = vector.broadcast %cst_18 : f32 to vector<64x256xf32>
    %41 = arith.subf %40, %39 : vector<64x256xf32>
    %42 = arith.mulf %14, %41 : vector<64x256xf32>
    %cst_19 = arith.constant 1.000000e+00 : f32
    %43 = vector.broadcast %cst_19 : f32 to vector<64x256xf32>
    %44 = arith.addf %43, %42 : vector<64x256xf32>
    %45 = arith.mulf %7, %44 : vector<64x256xf32>
    %46 = arith.truncf %45 : vector<64x256xf32> to vector<64x256xbf16>
    %c0_20 = arith.constant 0 : index
    %c0_21 = arith.constant 0 : index
    %47 = vector.load %arg4[%c0_20, %c0_21] : memref<256x128xbf16, #tpu.memory_space<vmem>>, vector<256x128xbf16>
    %cst_22 = arith.constant dense<0.000000e+00> : vector<64x128xf32>
    %48 = tpu.matmul %46, %47, %cst_22 {dimension_numbers = #tpu.dot_dimension_numbers<[1], [0], [0], [1], [0, 0, 1, 1], [], []>} : vector<64x256xbf16>, vector<256x128xbf16>, vector<64x128xf32> -> vector<64x128xf32>
    %c0_23 = arith.constant 0 : index
    %c0_24 = arith.constant 0 : index
    %49 = vector.load %arg5[%c0_23, %c0_24] : memref<1x128xf32, #tpu.memory_space<vmem>>, vector<1x128xf32>
    %50 = vector.broadcast %49 : vector<1x128xf32> to vector<64x128xf32>
    %51 = arith.addf %48, %50 : vector<64x128xf32>
    %c0_25 = arith.constant 0 : index
    %c0_26 = arith.constant 0 : index
    %52 = vector.load %arg6[%c0_25, %c0_26] : memref<64x128xf32, #tpu.memory_space<vmem>>, vector<64x128xf32>
    tpu.vector_store %arg6[%c0_25, %c0_26], %51 {strides = array<i32>} : memref<64x128xf32, #tpu.memory_space<vmem>>, vector<64x128xf32>,
    return
  }
  func.func @transform_0(%arg0: i32) -> (i32, i32) {
    %c0_i32 = arith.constant 0 : i32
    %c0_i32_0 = arith.constant 0 : i32
    return %arg0, %c0_i32 : i32, i32
  }
  func.func @transform_1(%arg0: i32) -> (i32, i32) {
    %c0_i32 = arith.constant 0 : i32
    %c0_i32_0 = arith.constant 0 : i32
    %c0_i32_1 = arith.constant 0 : i32
    return %c0_i32, %c0_i32_0 : i32, i32
  }
  func.func @transform_2(%arg0: i32) -> (i32, i32) {
    %c0_i32 = arith.constant 0 : i32
    %c0_i32_0 = arith.constant 0 : i32
    %c0_i32_1 = arith.constant 0 : i32
    return %c0_i32, %c0_i32_0 : i32, i32
  }
  func.func @transform_3(%arg0: i32) -> (i32, i32) {
    %c0_i32 = arith.constant 0 : i32
    %c0_i32_0 = arith.constant 0 : i32
    %c0_i32_1 = arith.constant 0 : i32
    return %c0_i32, %c0_i32_0 : i32, i32
  }
  func.func @transform_4(%arg0: i32) -> (i32, i32) {
    %c0_i32 = arith.constant 0 : i32
    %c0_i32_0 = arith.constant 0 : i32
    %c0_i32_1 = arith.constant 0 : i32
    return %c0_i32, %c0_i32_0 : i32, i32
  }
  func.func @transform_5(%arg0: i32) -> (i32, i32) {
    %c0_i32 = arith.constant 0 : i32
    %c0_i32_0 = arith.constant 0 : i32
    return %arg0, %c0_i32 : i32, i32
  }
}

module attributes {stable_mosaic.version = 11 : i64} {
  func.func @_mlp_kernel(%arg0: i32, %arg1: memref<64x128xbf16, #tpu.memory_space<vmem>>, %arg2: memref<128x256xbf16, #tpu.memory_space<vmem>>, %arg3: memref<1x256xf32, #tpu.memory_space<vmem>>, %arg4: memref<256x128xbf16, #tpu.memory_space<vmem>>, %arg5: memref<1x128xf32, #tpu.memory_space<vmem>>, %arg6: memref<64x128xf32, #tpu.memory_space<vmem>>) attributes {dimension_semantics = [#tpu.dimension_semantics<parallel>], iteration_bounds = array<i64: 2>, scalar_prefetch = 0 : i64, scratch_operands = 0 : i64, tpu.core_type = #tpu.core_type<tc>, window_params = [{transform_indices = @transform_0, window_bounds = array<i64: 64, 128>}, {pipeline_mode = #tpu.pipeline_mode<synchronous>, transform_indices = @transform_1, window_bounds = array<i64: 128, 256>}, {pipeline_mode = #tpu.pipeline_mode<synchronous>, transform_indices = @transform_2, window_bounds = array<i64: 1, 256>}, {pipeline_mode = #tpu.pipeline_mode<synchronous>, transform_indices = @transform_3, window_bounds = array<i64: 256, 128>}, {pipeline_mode = #tpu.pipeline_mode<synchronous>, transform_indices = @transform_4, window_bounds = array<i64: 1, 128>}, {transform_indices = @transform_5, window_bounds = array<i64: 64, 128>}]} {
    %c0 = arith.constant 0 : index
    %c0_0 = arith.constant 0 : index
    %0 = vector.load %arg1[%c0, %c0_0] : memref<64x128xbf16, #tpu.memory_space<vmem>>, vector<64x128xbf16>
    %c0_1 = arith.constant 0 : index
    %c0_2 = arith.constant 0 : index
    %1 = vector.load %arg2[%c0_1, %c0_2] : memref<128x256xbf16, #tpu.memory_space<vmem>>, vector<128x256xbf16>
    %cst = arith.constant dense<0.000000e+00> : vector<64x256xf32>
    %2 = tpu.matmul %0, %1, %cst {dimension_numbers = #tpu.dot_dimension_numbers<[1], [0], [0], [1], [0, 0, 1, 1], [], []>} : vector<64x128xbf16>, vector<128x256xbf16>, vector<64x256xf32> -> vector<64x256xf32>
    %c0_3 = arith.constant 0 : index
    %c0_4 = arith.constant 0 : index
    %3 = vector.load %arg3[%c0_3, %c0_4] : memref<1x256xf32, #tpu.memory_space<vmem>>, vector<1x256xf32>
    %4 = vector.broadcast %3 : vector<1x256xf32> to vector<64x256xf32>
    %5 = arith.addf %2, %4 : vector<64x256xf32>
    %cst_5 = arith.constant 5.000000e-01 : f32
    %6 = vector.broadcast %cst_5 : f32 to vector<64x256xf32>
    %7 = arith.mulf %6, %5 : vector<64x256xf32>
    %cst_6 = arith.constant 0.707106769 : f32
    %8 = vector.broadcast %cst_6 : f32 to vector<64x256xf32>
    %9 = arith.mulf %5, %8 : vector<64x256xf32>
    %cst_7 = arith.constant 0.000000e+00 : f32
    %10 = vector.broadcast %cst_7 : f32 to vector<64x256xf32>
    %11 = arith.cmpf oge, %9, %10 : vector<64x256xf32>
    %cst_8 = arith.constant 1.000000e+00 : f32
    %cst_9 = arith.constant -1.000000e+00 : f32
    %12 = vector.broadcast %cst_8 : f32 to vector<64x256xf32>
    %13 = vector.broadcast %cst_9 : f32 to vector<64x256xf32>
    %14 = arith.select %11, %12, %13 : vector<64x256xi1>, vector<64x256xf32>
    %15 = math.absf %9 : vector<64x256xf32>
    %cst_10 = arith.constant 0.327591091 : f32
    %16 = vector.broadcast %cst_10 : f32 to vector<64x256xf32>
    %17 = arith.mulf %16, %15 : vector<64x256xf32>
    %cst_11 = arith.constant 1.000000e+00 : f32
    %18 = vector.broadcast %cst_11 : f32 to vector<64x256xf32>
    %19 = arith.addf %18, %17 : vector<64x256xf32>
    %20 = tpu.reciprocal %19 {approx = true} : vector<64x256xf32> -> vector<64x256xf32>
    %cst_12 = arith.constant 1.06140542 : f32
    %21 = vector.broadcast %cst_12 : f32 to vector<64x256xf32>
    %22 = arith.mulf %21, %20 : vector<64x256xf32>
    %cst_13 = arith.constant -1.45315206 : f32
    %23 = vector.broadcast %cst_13 : f32 to vector<64x256xf32>
    %24 = arith.addf %22, %23 : vector<64x256xf32>
    %25 = arith.mulf %24, %20 : vector<64x256xf32>
    %cst_14 = arith.constant 1.42141378 : f32
    %26 = vector.broadcast %cst_14 : f32 to vector<64x256xf32>
    %27 = arith.addf %25, %26 : vector<64x256xf32>
    %28 = arith.mulf %27, %20 : vector<64x256xf32>
    %cst_15 = arith.constant -0.284496725 : f32
    %29 = vector.broadcast %cst_15 : f32 to vector<64x256xf32>
    %30 = arith.addf %28, %29 : vector<64x256xf32>
    %31 = arith.mulf %30, %20 : vector<64x256xf32>
    %cst_16 = arith.constant 0.254829586 : f32
    %32 = vector.broadcast %cst_16 : f32 to vector<64x256xf32>
    %33 = arith.addf %31, %32 : vector<64x256xf32>
    %34 = arith.mulf %33, %20 : vector<64x256xf32>
    %cst_17 = arith.constant 0.000000e+00 : f32
    %35 = vector.broadcast %cst_17 : f32 to vector<64x256xf32>
    %36 = arith.subf %35, %15 : vector<64x256xf32>
    %37 = arith.mulf %36, %15 : vector<64x256xf32>
    %38 = math.exp %37 : vector<64x256xf32>
    %39 = arith.mulf %34, %38 : vector<64x256xf32>
    %cst_18 = arith.constant 1.000000e+00 : f32
    %40 = vector.broadcast %cst_18 : f32 to vector<64x256xf32>
    %41 = arith.subf %40, %39 : vector<64x256xf32>
    %42 = arith.mulf %14, %41 : vector<64x256xf32>
    %cst_19 = arith.constant 1.000000e+00 : f32
    %43 = vector.broadcast %cst_19 : f32 to vector<64x256xf32>
    %44 = arith.addf %43, %42 : vector<64x256xf32>
    %45 = arith.mulf %7, %44 : vector<64x256xf32>
    %46 = arith.truncf %45 : vector<64x256xf32> to vector<64x256xbf16>
    %c0_20 = arith.constant 0 : index
    %c0_21 = arith.constant 0 : index
    %47 = vector.load %arg4[%c0_20, %c0_21] : memref<256x128xbf16, #tpu.memory_space<vmem>>, vector<256x128xbf16>
    %cst_22 = arith.constant dense<0.000000e+00> : vector<64x128xf32>
    %48 = tpu.matmul %46, %47, %cst_22 {dimension_numbers = #tpu.dot_dimension_numbers<[1], [0], [0], [1], [0, 0, 1, 1], [], []>} : vector<64x256xbf16>, vector<256x128xbf16>, vector<64x128xf32> -> vector<64x128xf32>
    %c0_23 = arith.constant 0 : index
    %c0_24 = arith.constant 0 : index
    %49 = vector.load %arg5[%c0_23, %c0_24] : memref<1x128xf32, #tpu.memory_space<vmem>>, vector<1x128xf32>
    %50 = vector.broadcast %49 : vector<1x128xf32> to vector<64x128xf32>
    %51 = arith.addf %48, %50 : vector<64x128xf32>
    %c0_25 = arith.constant 0 : index
    %c0_26 = arith.constant 0 : index
    %52 = vector.load %arg6[%c0_25, %c0_26] : memref<64x128xf32, #tpu.memory_space<vmem>>, vector<64x128xf32>
    tpu.vector_store %arg6[%c0_25, %c0_26], %51 {strides = array<i32>} : memref<64x128xf32, #tpu.memory_space<vmem>>, vector<64x128xf32>,
    return
  }
  func.func @transform_0(%arg0: i32) -> (i32, i32) {
    %c0_i32 = arith.constant 0 : i32
    %c0_i32_0 = arith.constant 0 : i32
    return %arg0, %c0_i32 : i32, i32
  }
  func.func @transform_1(%arg0: i32) -> (i32, i32) {
    %c0_i32 = arith.constant 0 : i32
    %c0_i32_0 = arith.constant 0 : i32
    %c0_i32_1 = arith.constant 0 : i32
    return %c0_i32, %c0_i32_0 : i32, i32
  }
  func.func @transform_2(%arg0: i32) -> (i32, i32) {
    %c0_i32 = arith.constant 0 : i32
    %c0_i32_0 = arith.constant 0 : i32
    %c0_i32_1 = arith.constant 0 : i32
    return %c0_i32, %c0_i32_0 : i32, i32
  }
  func.func @transform_3(%arg0: i32) -> (i32, i32) {
    %c0_i32 = arith.constant 0 : i32
    %c0_i32_0 = arith.constant 0 : i32
    %c0_i32_1 = arith.constant 0 : i32
    return %c0_i32, %c0_i32_0 : i32, i32
  }
  func.func @transform_4(%arg0: i32) -> (i32, i32) {
    %c0_i32 = arith.constant 0 : i32
    %c0_i32_0 = arith.constant 0 : i32
    %c0_i32_1 = arith.constant 0 : i32
    return %c0_i32, %c0_i32_0 : i32, i32
  }
  func.func @transform_5(%arg0: i32) -> (i32, i32) {
    %c0_i32 = arith.constant 0 : i32
    %c0_i32_0 = arith.constant 0 : i32
    return %arg0, %c0_i32 : i32, i32
  }
}

</mosaic_0001>

<llo_original>
// kernel: tpu_custom_call.1
$region0: #{tpu_custom_call.1}
  #allocation0 [shape = 'u32[]', space=smem, size = 0x4, offset = 0x4, fixed_abs, tag = 'smem constant byte address 0x4 - core index']
  #allocation1 [shape = 'u32[72,128]{1,0:T(1,128)}', space=vmem, size = 0x9000, scoped, tag = 'internal scratch']
  %s0 = inlined_call_operand.hbm [shape: bf16[128,128], index: 0, kind: input, shape index: {}]
  %s1 = inlined_call_operand.hbm [shape: bf16[128,256], index: 1, kind: input, shape index: {}]
  %s2 = inlined_call_operand.hbm [shape: f32[1,256], index: 2, kind: input, shape index: {}]
  %s3 = inlined_call_operand.hbm [shape: bf16[256,128], index: 3, kind: input, shape index: {}]
  %s4 = inlined_call_operand.vmem [shape: f32[1,128], index: 4, kind: input, shape index: {}]
  %s5 = inlined_call_operand.hbm [shape: f32[128,128], index: 5, kind: output, shape index: {}]
  %s6 = sld [smem:[#allocation0]]
  $region69: #{tpu_custom_call.1} parent=0
    _
  %s8 = ssub.s32 1, %s6
  %s9 = scalar_select 0, %s8, %s6
  $region1: #{tpu_custom_call.1} parent=0
    #allocation2 [shape = 'u8[32768]{0}', space=vmem, size = 0x8000, scoped, tag = 'input window, operand 0']
    #allocation3 [shape = 's32[2]{0}', space=sflag, size = 0x8, scoped, tag = 'scoped memory for tpu_custom_call.1']
    #allocation4 [shape = 's32[2]{0}', space=sflag, size = 0x8, scoped, tag = 'scoped memory for tpu_custom_call.1']
    #allocation5 [shape = 'u8[65536]{0}', space=vmem, size = 0x10000, scoped, tag = 'input window, operand 1, single buffered']
    #allocation6 [shape = 's32[1]{0}', space=sflag, size = 0x4, scoped, tag = 'scoped memory for tpu_custom_call.1']
    #allocation7 [shape = 'u8[1024]{0}', space=vmem, size = 0x400, scoped, tag = 'input window, operand 2, single buffered']
    #allocation8 [shape = 'u8[65536]{0}', space=vmem, size = 0x10000, scoped, tag = 'input window, operand 3, single buffered']
    #allocation9 [shape = 's32[1]{0}', space=sflag, size = 0x4, scoped, tag = 'scoped memory for tpu_custom_call.1']
    #allocation10 [shape = 'u8[65536]{0}', space=vmem, size = 0x10000, scoped, tag = 'output window, operand 0']
    %10 = vsyncpa [#allocation3], 0
    %s11 = scalar_lea.sflag [#allocation3], 1
    %12 = vsyncpa %s11, 0
    %13 = vsyncpa [#allocation6], 0
    %14 = vsyncpa [#allocation9], 0
    %15 = vsyncpa [#allocation4], 0
    %s16 = scalar_lea.sflag [#allocation4], 1
    %17 = vsyncpa %s16, 0
    loop: start=0, step=1, limit=4
    $region2: #{tpu_custom_call.1} parent=1 // loop_pre_header
      _
    $region3: #{tpu_custom_call.1} parent=1 // loop_header
      %s19 = sphi 0, %s23
      %p20 = scmp.ge.s32.totalorder %s19, 4
      %s29 = sphi 0, %s31
      %s32 = sphi 0, %s29
      %s33 = sphi 0, %s32
      %s49 = sphi 0, %s33
      %s53 = sphi 0, %s53
      %s55 = sphi 0, %s53
      %s56 = sphi 0, %s55
      %s70 = sphi 0, %s56
      %s74 = sphi 0, %s74
      %s76 = sphi 0, %s74
      %s77 = sphi 0, %s76
      %s91 = sphi 0, %s77
      %s95 = sphi 0, %s95
      %s97 = sphi 0, %s95
      %s98 = sphi 0, %s97
      %s112 = sphi 0, %s98
      %s116 = sphi 0, %s116
      %s118 = sphi 0, %s116
      %s119 = sphi 0, %s118
      %s133 = sphi 0, %s119
      %s139 = sphi 0, %s141
      %s142 = sphi 0, %s139
      %s143 = sphi 0, %s142
      %s159 = sphi 0, %s143
    $region4: #{tpu_custom_call.1} parent=1 // loop_header_branch
      %22 = sbr.rel (%p20) target = $region8
    $region5: #{tpu_custom_call.1} parent=1 // loop_body
      %s24 = ssub.s32 %s19, 1
      %s25 = ssub.s32 %s19, 2
      %s26 = sadd.s32 %s19, 1
      %s27 = ssub.s32 %s19, %s26
      %p28 = scmp.eq.s32.totalorder %s27, 0
      %s30 = sadd.s32 %s29, 1
      %s31 = scalar_select %p28, %s29, %s30
      %p34 = pneg %p28
      %p35 = scmp.eq.s32.totalorder %s19, 1
      %p36 = por %p34, %p35
      %p37 = scmp.ne.s32.totalorder %s29, %s32
      %p38 = scmp.eq.s32.totalorder %s19, 0
      %p39 = por %p37, %p38
      %p40 = scmp.ne.s32.totalorder %s29, %s32
      %p41 = scmp.eq.s32.totalorder %s24, 1
      %p42 = por %p40, %p41
      %p43 = scmp.ne.s32.totalorder %s32, %s33
      %p44 = scmp.eq.s32.totalorder %s24, 0
      %p45 = por %p43, %p44
      %p46 = scmp.ne.s32.totalorder %s32, %s33
      %p47 = scmp.eq.s32.totalorder %s25, 1
      %p48 = por %p46, %p47
      %p50 = scmp.ne.s32.totalorder %s33, %s49
      %p51 = scmp.eq.s32.totalorder %s25, 0
      %p52 = por %p50, %p51
      %s54 = sadd.s32 %s53, 1
      %p57 = scmp.eq.s32.totalorder %s19, 1
      %p58 = scmp.ne.s32.totalorder %s53, %s55
      %p59 = scmp.eq.s32.totalorder %s19, 0
      %p60 = por %p58, %p59
      %p61 = scmp.ne.s32.totalorder %s53, %s55
      %p62 = scmp.eq.s32.totalorder %s24, 1
      %p63 = por %p61, %p62
      %p64 = scmp.ne.s32.totalorder %s55, %s56
      %p65 = scmp.eq.s32.totalorder %s24, 0
      %p66 = por %p64, %p65
      %p67 = scmp.ne.s32.totalorder %s55, %s56
      %p68 = scmp.eq.s32.totalorder %s25, 1
      %p69 = por %p67, %p68
      %p71 = scmp.ne.s32.totalorder %s56, %s70
      %p72 = scmp.eq.s32.totalorder %s25, 0
      %p73 = por %p71, %p72
      %s75 = sadd.s32 %s74, 1
      %p78 = scmp.eq.s32.totalorder %s19, 1
      %p79 = scmp.ne.s32.totalorder %s74, %s76
      %p80 = scmp.eq.s32.totalorder %s19, 0
      %p81 = por %p79, %p80
      %p82 = scmp.ne.s32.totalorder %s74, %s76
      %p83 = scmp.eq.s32.totalorder %s24, 1
      %p84 = por %p82, %p83
      %p85 = scmp.ne.s32.totalorder %s76, %s77
      %p86 = scmp.eq.s32.totalorder %s24, 0
      %p87 = por %p85, %p86
      %p88 = scmp.ne.s32.totalorder %s76, %s77
      %p89 = scmp.eq.s32.totalorder %s25, 1
      %p90 = por %p88, %p89
      %p92 = scmp.ne.s32.totalorder %s77, %s91
      %p93 = scmp.eq.s32.totalorder %s25, 0
      %p94 = por %p92, %p93
      %s96 = sadd.s32 %s95, 1
      %p99 = scmp.eq.s32.totalorder %s19, 1
      %p100 = scmp.ne.s32.totalorder %s95, %s97
      %p101 = scmp.eq.s32.totalorder %s19, 0
      %p102 = por %p100, %p101
      %p103 = scmp.ne.s32.totalorder %s95, %s97
      %p104 = scmp.eq.s32.totalorder %s24, 1
      %p105 = por %p103, %p104
      %p106 = scmp.ne.s32.totalorder %s97, %s98
      %p107 = scmp.eq.s32.totalorder %s24, 0
      %p108 = por %p106, %p107
      %p109 = scmp.ne.s32.totalorder %s97, %s98
      %p110 = scmp.eq.s32.totalorder %s25, 1
      %p111 = por %p109, %p110
      %p113 = scmp.ne.s32.totalorder %s98, %s112
      %p114 = scmp.eq.s32.totalorder %s25, 0
      %p115 = por %p113, %p114
      %s117 = sadd.s32 %s116, 1
      %p120 = scmp.eq.s32.totalorder %s19, 1
      %p121 = scmp.ne.s32.totalorder %s116, %s118
      %p122 = scmp.eq.s32.totalorder %s19, 0
      %p123 = por %p121, %p122
      %p124 = scmp.ne.s32.totalorder %s116, %s118
      %p125 = scmp.eq.s32.totalorder %s24, 1
      %p126 = por %p124, %p125
      %p127 = scmp.ne.s32.totalorder %s118, %s119
      %p128 = scmp.eq.s32.totalorder %s24, 0
      %p129 = por %p127, %p128
      %p130 = scmp.ne.s32.totalorder %s118, %s119
      %p131 = scmp.eq.s32.totalorder %s25, 1
      %p132 = por %p130, %p131
      %p134 = scmp.ne.s32.totalorder %s119, %s133
      %p135 = scmp.eq.s32.totalorder %s25, 0
      %p136 = por %p134, %p135
      %s137 = ssub.s32 %s19, %s26
      %p138 = scmp.eq.s32.totalorder %s137, 0
      %s140 = sadd.s32 %s139, 1
      %s141 = scalar_select %p138, %s139, %s140
      %p144 = pneg %p138
      %p145 = scmp.eq.s32.totalorder %s19, 1
      %p146 = por %p144, %p145
      %p147 = scmp.ne.s32.totalorder %s139, %s142
      %p148 = scmp.eq.s32.totalorder %s19, 0
      %p149 = por %p147, %p148
      %p150 = scmp.ne.s32.totalorder %s139, %s142
      %p151 = scmp.eq.s32.totalorder %s24, 1
      %p152 = por %p150, %p151
      %p153 = scmp.ne.s32.totalorder %s142, %s143
      %p154 = scmp.eq.s32.totalorder %s24, 0
      %p155 = por %p153, %p154
      %p156 = scmp.ne.s32.totalorder %s142, %s143
      %p157 = scmp.eq.s32.totalorder %s25, 1
      %p158 = por %p156, %p157
      %p160 = scmp.ne.s32.totalorder %s143, %s159
      %p161 = scmp.eq.s32.totalorder %s25, 0
      %p162 = por %p160, %p161
      %p163 = scmp.le.s32.totalorder 1, %s19
      %p164 = scmp.lt.s32.totalorder %s19, 3
      %p165 = pnand %p163, %p164
      %p166 = pneg %p165
      // Predicated region
      $region9: #{tpu_custom_call.1} parent=5 // pred_check
        _
      $region10: #{tpu_custom_call.1} parent=5 // pred_check_branch
        %168 = sbr.rel (%p165) target = $region12
      $region11: #{tpu_custom_call.1} parent=5 // pred_region
        %s169 = ssub.s32 %s19, 1
        // Predicated region
        $region13: #{tpu_custom_call.1} parent=11 // pred_check
          %p170 = pneg %p66
        $region14: #{tpu_custom_call.1} parent=11 // pred_check_branch
          %172 = sbr.rel (%p170) target = $region16
        $region15: #{tpu_custom_call.1} parent=11 // pred_region
          %174 = vsyncadd [#allocation6], 0
          %s175 = sshll.u32 %s1, 4
          %s176 = int_to_ptr.hbm [resolvable:$true] %s175
          %s177 = sshll.u32 [#allocation5], 4
          %s178 = int_to_ptr.vmem [resolvable:$true] %s177
          %183 = dma.hbm_to_vmem [thread:$0]  %s176, 2048, %s178, [#allocation6], 128, 128, 8
        $region16: #{tpu_custom_call.1} parent=11 // pred_fallthru
          _
        // Predicated region
        $region17: #{tpu_custom_call.1} parent=11 // pred_check
          %p184 = pneg %p87
        $region18: #{tpu_custom_call.1} parent=11 // pred_check_branch
          %186 = sbr.rel (%p184) target = $region20
        $region19: #{tpu_custom_call.1} parent=11 // pred_region
          %188 = vsyncadd [#allocation6], 0
          %s190 = sshll.u32 %s2, 4
          %s191 = int_to_ptr.hbm [resolvable:$true] %s190
          %s192 = sshll.u32 [#allocation7], 4
          %s193 = int_to_ptr.vmem [resolvable:$true] %s192
          %195 = dma.hbm_to_vmem [thread:$0]  %s191, 32, %s193, [#allocation6]
        $region20: #{tpu_custom_call.1} parent=11 // pred_fallthru
          _
        // Predicated region
        $region21: #{tpu_custom_call.1} parent=11 // pred_check
          %p196 = pneg %p108
        $region22: #{tpu_custom_call.1} parent=11 // pred_check_branch
          %198 = sbr.rel (%p196) target = $region24
        $region23: #{tpu_custom_call.1} parent=11 // pred_region
          %200 = vsyncadd [#allocation9], 0
          %s201 = sshll.u32 %s3, 4
          %s202 = int_to_ptr.hbm [resolvable:$true] %s201
          %s203 = sshll.u32 [#allocation8], 4
          %s204 = int_to_ptr.vmem [resolvable:$true] %s203
          %209 = dma.hbm_to_vmem [thread:$0]  %s202, 2048, %s204, [#allocation9], 64, 64, 4
        $region24: #{tpu_custom_call.1} parent=11 // pred_fallthru
          _
        // Predicated region
        $region25: #{tpu_custom_call.1} parent=11 // pred_check
          %p210 = pneg %p129
        $region26: #{tpu_custom_call.1} parent=11 // pred_check_branch
          %212 = sbr.rel (%p210) target = $region28
        $region27: #{tpu_custom_call.1} parent=11 // pred_region
          _
        $region28: #{tpu_custom_call.1} parent=11 // pred_fallthru
          _
      $region12: #{tpu_custom_call.1} parent=5 // pred_fallthru
        _
      %p213 = scmp.lt.s32.totalorder %s19, 2
      // Predicated region
      $region29: #{tpu_custom_call.1} parent=5 // pred_check
        %p214 = pneg %p213
      $region30: #{tpu_custom_call.1} parent=5 // pred_check_branch
        %216 = sbr.rel (%p214) target = $region32
      $region31: #{tpu_custom_call.1} parent=5 // pred_region
        // Predicated region
        $region33: #{tpu_custom_call.1} parent=31 // pred_check
          %p217 = pneg %p39
        $region34: #{tpu_custom_call.1} parent=31 // pred_check_branch
          %219 = sbr.rel (%p217) target = $region36
        $region35: #{tpu_custom_call.1} parent=31 // pred_region
          %s220 = sand.u32 %s29, 1
          %s221 = scalar_lea.sflag [#allocation3], %s220
          %s222 = sand.u32 %s29, 1
          %s223 = smul.addr %s222, 32
          %s224 = scalar_lea.vmem [#allocation2], %s223
          %s225 = smul.u32 8, %s19
          %227 = vsyncadd %s221, 0
          %s228 = smul.addr %s225, 4
          %s229 = scalar_lea.hbm %s0, %s228
          %s230 = sshll.u32 %s229, 4
          %s231 = int_to_ptr.hbm [resolvable:$true] %s230
          %s232 = sshll.u32 %s224, 4
          %s233 = int_to_ptr.vmem [resolvable:$true] %s232
          %238 = dma.hbm_to_vmem [thread:$0]  %s231, 512, %s233, %s221, 64, 64, 4
        $region36: #{tpu_custom_call.1} parent=31 // pred_fallthru
          _
      $region32: #{tpu_custom_call.1} parent=5 // pred_fallthru
        _
      %p239 = scmp.le.s32.totalorder 1, %s19
      %p240 = scmp.lt.s32.totalorder %s19, 3
      %p241 = pnand %p239, %p240
      %p242 = pneg %p241
      // Predicated region
      $region37: #{tpu_custom_call.1} parent=5 // pred_check
        _
      $region38: #{tpu_custom_call.1} parent=5 // pred_check_branch
        %244 = sbr.rel (%p241) target = $region40
      $region39: #{tpu_custom_call.1} parent=5 // pred_region
        %s245 = ssub.s32 %s19, 1
        %s246 = sand.u32 %s32, 1
        %s247 = scalar_lea.sflag [#allocation3], %s246
        %s248 = sand.u32 %s32, 1
        %s249 = smul.addr %s248, 32
        %s250 = scalar_lea.vmem [#allocation2], %s249
        // Predicated region
        $region41: #{tpu_custom_call.1} parent=39 // pred_check
          %p251 = pneg %p45
        $region42: #{tpu_custom_call.1} parent=39 // pred_check_branch
          %253 = sbr.rel (%p251) target = $region44
        $region43: #{tpu_custom_call.1} parent=39 // pred_region
          %255 = dma.done %s247, 512
        $region44: #{tpu_custom_call.1} parent=39 // pred_fallthru
          _
        // Predicated region
        $region45: #{tpu_custom_call.1} parent=39 // pred_check
          %p256 = pneg %p66
        $region46: #{tpu_custom_call.1} parent=39 // pred_check_branch
          %258 = sbr.rel (%p256) target = $region48
        $region47: #{tpu_custom_call.1} parent=39 // pred_region
          %260 = dma.done [#allocation6], 2048
        $region48: #{tpu_custom_call.1} parent=39 // pred_fallthru
          _
        // Predicated region
        $region49: #{tpu_custom_call.1} parent=39 // pred_check
          %p261 = pneg %p87
        $region50: #{tpu_custom_call.1} parent=39 // pred_check_branch
          %263 = sbr.rel (%p261) target = $region52
        $region51: #{tpu_custom_call.1} parent=39 // pred_region
          %265 = dma.done [#allocation6], 32
        $region52: #{tpu_custom_call.1} parent=39 // pred_fallthru
          _
        // Predicated region
        $region53: #{tpu_custom_call.1} parent=39 // pred_check
          %p266 = pneg %p108
        $region54: #{tpu_custom_call.1} parent=39 // pred_check_branch
          %268 = sbr.rel (%p266) target = $region56
        $region55: #{tpu_custom_call.1} parent=39 // pred_region
          %270 = dma.done [#allocation9], 2048
        $region56: #{tpu_custom_call.1} parent=39 // pred_fallthru
          _
        %s271 = sand.u32 %s32, 1
        %s272 = scalar_lea.sflag [#allocation3], %s271
        %s273 = sand.u32 %s32, 1
        %s274 = smul.addr %s273, 32
        %s275 = scalar_lea.vmem [#allocation2], %s274
        %p276 = pneg %p45
        %p277 = pneg %p42
        %p278 = pneg %p66
        %p279 = pneg %p63
        %p280 = pneg %p87
        %p281 = pneg %p84
        %p282 = pneg %p108
        %p283 = pneg %p105
        %p284 = pneg %p129
        %p285 = pneg %p126
        %p286 = pneg %p155
        %p287 = pneg %p152
        %s288 = sand.u32 %s142, 1
        %s289 = scalar_lea.sflag [#allocation4], %s288
        %s290 = sand.u32 %s142, 1
        %s291 = smul.addr %s290, 64
        %s292 = scalar_lea.vmem [#allocation10], %s291
        %s293 = smul.u32 8, %s24
        %s294 = smul.u32 8, %s24
        %v295 = vld [vmem:[%s250] sm:$0xf]
        %v296 = vld [vmem:[%s250 + $0x4] sm:$0xf]
        %v297 = vld [vmem:[%s250 + $0x8] sm:$0xf]
        %v298 = vld [vmem:[%s250 + $0xc] sm:$0xf]
        %v299 = vld [vmem:[%s250 + $0x10] sm:$0xf]
        %v300 = vld [vmem:[%s250 + $0x14] sm:$0xf]
        %v301 = vld [vmem:[%s250 + $0x18] sm:$0xf]
        %v302 = vld [vmem:[%s250 + $0x1c] sm:$0xf]
        %v303 = vld [vmem:[#allocation5] sm:$0xff]
        %v304 = vld [vmem:[#allocation5 + $0x8] sm:$0xff]
        %v305 = vld [vmem:[#allocation5 + $0x10] sm:$0xff]
        %v306 = vld [vmem:[#allocation5 + $0x18] sm:$0xff]
        %v307 = vld [vmem:[#allocation5 + $0x20] sm:$0xff]
        %v308 = vld [vmem:[#allocation5 + $0x28] sm:$0xff]
        %v309 = vld [vmem:[#allocation5 + $0x30] sm:$0xff]
        %v310 = vld [vmem:[#allocation5 + $0x38] sm:$0xff]
        %v311 = vld [vmem:[#allocation5 + $0x40] sm:$0xff]
        %v312 = vld [vmem:[#allocation5 + $0x48] sm:$0xff]
        %v313 = vld [vmem:[#allocation5 + $0x50] sm:$0xff]
        %v314 = vld [vmem:[#allocation5 + $0x58] sm:$0xff]
        %v315 = vld [vmem:[#allocation5 + $0x60] sm:$0xff]
        %v316 = vld [vmem:[#allocation5 + $0x68] sm:$0xff]
        %v317 = vld [vmem:[#allocation5 + $0x70] sm:$0xff]
        %v318 = vld [vmem:[#allocation5 + $0x78] sm:$0xff]
        %v319 = vld [vmem:[#allocation7] sm:$0x3]
        %v321 = vperm.slane %v319, 0
        %v322 = vperm.slane %v319, 1
        %v333 = vunpack.c.l.b16 %v295
        %v334 = vunpack.c.l.b16 %v296
        %v335 = vunpack.c.l.b16 %v297
        %v336 = vunpack.c.l.b16 %v298
        %v337 = vunpack.c.l.b16 %v299
        %v338 = vunpack.c.l.b16 %v300
        %v339 = vunpack.c.l.b16 %v301
        %v340 = vunpack.c.l.b16 %v302
        %v341 = vpack.c.b16 %v334, %v333
        %v342 = vpack.c.b16 %v336, %v335
        %v343 = vpack.c.b16 %v338, %v337
        %v344 = vpack.c.b16 %v340, %v339
        %v365 = vunpack.c.l.b16 %v303
        %v366 = vunpack.c.h.b16 %v303
        %v367 = vunpack.c.l.b16 %v304
        %v368 = vunpack.c.h.b16 %v304
        %v369 = vunpack.c.l.b16 %v305
        %v370 = vunpack.c.h.b16 %v305
        %v371 = vunpack.c.l.b16 %v306
        %v372 = vunpack.c.h.b16 %v306
        %v373 = vunpack.c.l.b16 %v307
        %v374 = vunpack.c.h.b16 %v307
        %v375 = vunpack.c.l.b16 %v308
        %v376 = vunpack.c.h.b16 %v308
        %v377 = vunpack.c.l.b16 %v309
        %v378 = vunpack.c.h.b16 %v309
        %v379 = vunpack.c.l.b16 %v310
        %v380 = vunpack.c.h.b16 %v310
        %v381 = vunpack.c.l.b16 %v311
        %v382 = vunpack.c.h.b16 %v311
        %v383 = vunpack.c.l.b16 %v312
        %v384 = vunpack.c.h.b16 %v312
        %v385 = vunpack.c.l.b16 %v313
        %v386 = vunpack.c.h.b16 %v313
        %v387 = vunpack.c.l.b16 %v314
        %v388 = vunpack.c.h.b16 %v314
        %v389 = vunpack.c.l.b16 %v315
        %v390 = vunpack.c.h.b16 %v315
        %v391 = vunpack.c.l.b16 %v316
        %v392 = vunpack.c.h.b16 %v316
        %v393 = vunpack.c.l.b16 %v317
        %v394 = vunpack.c.h.b16 %v317
        %v395 = vunpack.c.l.b16 %v318
        %v396 = vunpack.c.h.b16 %v318
        %v397 = vpack.c.b16 %v367, %v365
        %v398 = vpack.c.b16 %v368, %v366
        %v399 = vpack.c.b16 %v371, %v369
        %v400 = vpack.c.b16 %v372, %v370
        %v401 = vpack.c.b16 %v375, %v373
        %v402 = vpack.c.b16 %v376, %v374
        %v403 = vpack.c.b16 %v379, %v377
        %v404 = vpack.c.b16 %v380, %v378
        %v405 = vpack.c.b16 %v383, %v381
        %v406 = vpack.c.b16 %v384, %v382
        %v407 = vpack.c.b16 %v387, %v385
        %v408 = vpack.c.b16 %v388, %v386
        %v409 = vpack.c.b16 %v391, %v389
        %v410 = vpack.c.b16 %v392, %v390
        %v411 = vpack.c.b16 %v395, %v393
        %v412 = vpack.c.b16 %v396, %v394
        %429 = vmatpush.bf16.msra.mxu0 %v411
        %430 = vmatpush.bf16.msra.mxu0 %v409
        %431 = vmatpush.bf16.msra.mxu0 %v407
        %432 = vmatpush.bf16.msra.mxu0 %v405
        %433 = vmatpush.bf16.msra.mxu0 %v403
        %434 = vmatpush.bf16.msra.mxu0 %v401
        %435 = vmatpush.bf16.msra.mxu0 %v399
        %436 = vmatpush.bf16.msra.mxu0 %v397
        %437 = vmatmul.bf16.gmra.mxu0 %v341
        %v438 = vpop.f32.mrf.mxu0
        %v439 = vadd.f32 %v321, %v438
        %v440 = vpop.f32.mrf.mxu0
        %v441 = vadd.f32 %v321, %v440
        %442 = vmatmul.bf16.gmra.mxu0 %v342
        %v443 = vpop.f32.mrf.mxu0
        %v444 = vadd.f32 %v321, %v443
        %v445 = vpop.f32.mrf.mxu0
        %v446 = vadd.f32 %v321, %v445
        %447 = vmatmul.bf16.gmra.mxu0 %v343
        %v448 = vpop.f32.mrf.mxu0
        %v449 = vadd.f32 %v321, %v448
        %v450 = vpop.f32.mrf.mxu0
        %v451 = vadd.f32 %v321, %v450
        %452 = vmatmul.bf16.gmra.mxu0 %v344
        %v453 = vpop.f32.mrf.mxu0
        %v454 = vadd.f32 %v321, %v453
        %v455 = vpop.f32.mrf.mxu0
        %v456 = vadd.f32 %v321, %v455
        %457 = vdwg.mxu0
        %458 = vmatpush.bf16.msra.mxu0 %v412
        %459 = vmatpush.bf16.msra.mxu0 %v410
        %460 = vmatpush.bf16.msra.mxu0 %v408
        %461 = vmatpush.bf16.msra.mxu0 %v406
        %462 = vmatpush.bf16.msra.mxu0 %v404
        %463 = vmatpush.bf16.msra.mxu0 %v402
        %464 = vmatpush.bf16.msra.mxu0 %v400
        %465 = vmatpush.bf16.msra.mxu0 %v398
        %466 = vmatmul.bf16.gmra.mxu0 %v341
        %v467 = vpop.f32.mrf.mxu0
        %v468 = vadd.f32 %v322, %v467
        %v469 = vpop.f32.mrf.mxu0
        %v470 = vadd.f32 %v322, %v469
        %471 = vmatmul.bf16.gmra.mxu0 %v342
        %v472 = vpop.f32.mrf.mxu0
        %v473 = vadd.f32 %v322, %v472
        %v474 = vpop.f32.mrf.mxu0
        %v475 = vadd.f32 %v322, %v474
        %476 = vmatmul.bf16.gmra.mxu0 %v343
        %v477 = vpop.f32.mrf.mxu0
        %v478 = vadd.f32 %v322, %v477
        %v479 = vpop.f32.mrf.mxu0
        %v480 = vadd.f32 %v322, %v479
        %481 = vmatmul.bf16.gmra.mxu0 %v344
        %v482 = vpop.f32.mrf.mxu0
        %v483 = vadd.f32 %v322, %v482
        %v484 = vpop.f32.mrf.mxu0
        %v485 = vadd.f32 %v322, %v484
        %486 = vdwg.mxu0
        %v487 = vmul.f32 %v439, 0.5
        %v488 = vmul.f32 %v468, 0.5
        %v489 = vmul.f32 %v441, 0.5
        %v490 = vmul.f32 %v470, 0.5
        %v491 = vmul.f32 %v444, 0.5
        %v492 = vmul.f32 %v473, 0.5
        %v493 = vmul.f32 %v446, 0.5
        %v494 = vmul.f32 %v475, 0.5
        %v495 = vmul.f32 %v449, 0.5
        %v496 = vmul.f32 %v478, 0.5
        %v497 = vmul.f32 %v451, 0.5
        %v498 = vmul.f32 %v480, 0.5
        %v499 = vmul.f32 %v454, 0.5
        %v500 = vmul.f32 %v483, 0.5
        %v501 = vmul.f32 %v456, 0.5
        %v502 = vmul.f32 %v485, 0.5
        %v503 = vmul.f32 %v439, 0.70710677
        %v504 = vmul.f32 %v468, 0.70710677
        %v505 = vmul.f32 %v441, 0.70710677
        %v506 = vmul.f32 %v470, 0.70710677
        %v507 = vmul.f32 %v444, 0.70710677
        %v508 = vmul.f32 %v473, 0.70710677
        %v509 = vmul.f32 %v446, 0.70710677
        %v510 = vmul.f32 %v475, 0.70710677
        %v511 = vmul.f32 %v449, 0.70710677
        %v512 = vmul.f32 %v478, 0.70710677
        %v513 = vmul.f32 %v451, 0.70710677
        %v514 = vmul.f32 %v480, 0.70710677
        %v515 = vmul.f32 %v454, 0.70710677
        %v516 = vmul.f32 %v483, 0.70710677
        %v517 = vmul.f32 %v456, 0.70710677
        %v518 = vmul.f32 %v485, 0.70710677
        %vm519 = vcmp.ge.f32.partialorder %v503, 0.0
        %vm520 = vcmp.ge.f32.partialorder %v504, 0.0
        %vm521 = vcmp.ge.f32.partialorder %v505, 0.0
        %vm522 = vcmp.ge.f32.partialorder %v506, 0.0
        %vm523 = vcmp.ge.f32.partialorder %v507, 0.0
        %vm524 = vcmp.ge.f32.partialorder %v508, 0.0
        %vm525 = vcmp.ge.f32.partialorder %v509, 0.0
        %vm526 = vcmp.ge.f32.partialorder %v510, 0.0
        %vm527 = vcmp.ge.f32.partialorder %v511, 0.0
        %vm528 = vcmp.ge.f32.partialorder %v512, 0.0
        %vm529 = vcmp.ge.f32.partialorder %v513, 0.0
        %vm530 = vcmp.ge.f32.partialorder %v514, 0.0
        %vm531 = vcmp.ge.f32.partialorder %v515, 0.0
        %vm532 = vcmp.ge.f32.partialorder %v516, 0.0
        %vm533 = vcmp.ge.f32.partialorder %v517, 0.0
        %vm534 = vcmp.ge.f32.partialorder %v518, 0.0
        %v535 = vsel %vm519, 1.0, -1.0
        %v536 = vsel %vm520, 1.0, -1.0
        %v537 = vsel %vm521, 1.0, -1.0
        %v538 = vsel %vm522, 1.0, -1.0
        %v539 = vsel %vm523, 1.0, -1.0
        %v540 = vsel %vm524, 1.0, -1.0
        %v541 = vsel %vm525, 1.0, -1.0
        %v542 = vsel %vm526, 1.0, -1.0
        %v543 = vsel %vm527, 1.0, -1.0
        %v544 = vsel %vm528, 1.0, -1.0
        %v545 = vsel %vm529, 1.0, -1.0
        %v546 = vsel %vm530, 1.0, -1.0
        %v547 = vsel %vm531, 1.0, -1.0
        %v548 = vsel %vm532, 1.0, -1.0
        %v549 = vsel %vm533, 1.0, -1.0
        %v550 = vsel %vm534, 1.0, -1.0
        %v551 = vand.u32 2147483647, %v503
        %v552 = vand.u32 2147483647, %v504
        %v553 = vand.u32 2147483647, %v505
        %v554 = vand.u32 2147483647, %v506
        %v555 = vand.u32 2147483647, %v507
        %v556 = vand.u32 2147483647, %v508
        %v557 = vand.u32 2147483647, %v509
        %v558 = vand.u32 2147483647, %v510
        %v559 = vand.u32 2147483647, %v511
        %v560 = vand.u32 2147483647, %v512
        %v561 = vand.u32 2147483647, %v513
        %v562 = vand.u32 2147483647, %v514
        %v563 = vand.u32 2147483647, %v515
        %v564 = vand.u32 2147483647, %v516
        %v565 = vand.u32 2147483647, %v517
        %v566 = vand.u32 2147483647, %v518
        %v567 = vmul.f32 %v551, 0.3275911
        %v568 = vmul.f32 %v552, 0.3275911
        %v569 = vmul.f32 %v553, 0.3275911
        %v570 = vmul.f32 %v554, 0.3275911
        %v571 = vmul.f32 %v555, 0.3275911
        %v572 = vmul.f32 %v556, 0.3275911
        %v573 = vmul.f32 %v557, 0.3275911
        %v574 = vmul.f32 %v558, 0.3275911
        %v575 = vmul.f32 %v559, 0.3275911
        %v576 = vmul.f32 %v560, 0.3275911
        %v577 = vmul.f32 %v561, 0.3275911
        %v578 = vmul.f32 %v562, 0.3275911
        %v579 = vmul.f32 %v563, 0.3275911
        %v580 = vmul.f32 %v564, 0.3275911
        %v581 = vmul.f32 %v565, 0.3275911
        %v582 = vmul.f32 %v566, 0.3275911
        %v583 = vadd.f32 %v567, 1.0
        %v584 = vadd.f32 %v568, 1.0
        %v585 = vadd.f32 %v569, 1.0
        %v586 = vadd.f32 %v570, 1.0
        %v587 = vadd.f32 %v571, 1.0
        %v588 = vadd.f32 %v572, 1.0
        %v589 = vadd.f32 %v573, 1.0
        %v590 = vadd.f32 %v574, 1.0
        %v591 = vadd.f32 %v575, 1.0
        %v592 = vadd.f32 %v576, 1.0
        %v593 = vadd.f32 %v577, 1.0
        %v594 = vadd.f32 %v578, 1.0
        %v595 = vadd.f32 %v579, 1.0
        %v596 = vadd.f32 %v580, 1.0
        %v597 = vadd.f32 %v581, 1.0
        %v598 = vadd.f32 %v582, 1.0
        %v599 = vrcp.pop %v583
        %v600 = vrcp.pop %v584
        %v601 = vrcp.pop %v585
        %v602 = vrcp.pop %v586
        %v603 = vrcp.pop %v587
        %v604 = vrcp.pop %v588
        %v605 = vrcp.pop %v589
        %v606 = vrcp.pop %v590
        %v607 = vrcp.pop %v591
        %v608 = vrcp.pop %v592
        %v609 = vrcp.pop %v593
        %v610 = vrcp.pop %v594
        %v611 = vrcp.pop %v595
        %v612 = vrcp.pop %v596
        %v613 = vrcp.pop %v597
        %v614 = vrcp.pop %v598
        %v615 = vmul.f32 %v599, 1.0614054
        %v616 = vmul.f32 %v600, 1.0614054
        %v617 = vmul.f32 %v601, 1.0614054
        %v618 = vmul.f32 %v602, 1.0614054
        %v619 = vmul.f32 %v603, 1.0614054
        %v620 = vmul.f32 %v604, 1.0614054
        %v621 = vmul.f32 %v605, 1.0614054
        %v622 = vmul.f32 %v606, 1.0614054
        %v623 = vmul.f32 %v607, 1.0614054
        %v624 = vmul.f32 %v608, 1.0614054
        %v625 = vmul.f32 %v609, 1.0614054
        %v626 = vmul.f32 %v610, 1.0614054
        %v627 = vmul.f32 %v611, 1.0614054
        %v628 = vmul.f32 %v612, 1.0614054
        %v629 = vmul.f32 %v613, 1.0614054
        %v630 = vmul.f32 %v614, 1.0614054
        %v631 = vadd.f32 %v615, -1.4531521
        %v632 = vadd.f32 %v616, -1.4531521
        %v633 = vadd.f32 %v617, -1.4531521
        %v634 = vadd.f32 %v618, -1.4531521
        %v635 = vadd.f32 %v619, -1.4531521
        %v636 = vadd.f32 %v620, -1.4531521
        %v637 = vadd.f32 %v621, -1.4531521
        %v638 = vadd.f32 %v622, -1.4531521
        %v639 = vadd.f32 %v623, -1.4531521
        %v640 = vadd.f32 %v624, -1.4531521
        %v641 = vadd.f32 %v625, -1.4531521
        %v642 = vadd.f32 %v626, -1.4531521
        %v643 = vadd.f32 %v627, -1.4531521
        %v644 = vadd.f32 %v628, -1.4531521
        %v645 = vadd.f32 %v629, -1.4531521
        %v646 = vadd.f32 %v630, -1.4531521
        %v647 = vmul.f32 %v631, %v599
        %v648 = vmul.f32 %v632, %v600
        %v649 = vmul.f32 %v633, %v601
        %v650 = vmul.f32 %v634, %v602
        %v651 = vmul.f32 %v635, %v603
        %v652 = vmul.f32 %v636, %v604
        %v653 = vmul.f32 %v637, %v605
        %v654 = vmul.f32 %v638, %v606
        %v655 = vmul.f32 %v639, %v607
        %v656 = vmul.f32 %v640, %v608
        %v657 = vmul.f32 %v641, %v609
        %v658 = vmul.f32 %v642, %v610
        %v659 = vmul.f32 %v643, %v611
        %v660 = vmul.f32 %v644, %v612
        %v661 = vmul.f32 %v645, %v613
        %v662 = vmul.f32 %v646, %v614
        %v663 = vadd.f32 %v647, 1.4214138
        %v664 = vadd.f32 %v648, 1.4214138
        %v665 = vadd.f32 %v649, 1.4214138
        %v666 = vadd.f32 %v650, 1.4214138
        %v667 = vadd.f32 %v651, 1.4214138
        %v668 = vadd.f32 %v652, 1.4214138
        %v669 = vadd.f32 %v653, 1.4214138
        %v670 = vadd.f32 %v654, 1.4214138
        %v671 = vadd.f32 %v655, 1.4214138
        %v672 = vadd.f32 %v656, 1.4214138
        %v673 = vadd.f32 %v657, 1.4214138
        %v674 = vadd.f32 %v658, 1.4214138
        %v675 = vadd.f32 %v659, 1.4214138
        %v676 = vadd.f32 %v660, 1.4214138
        %v677 = vadd.f32 %v661, 1.4214138
        %v678 = vadd.f32 %v662, 1.4214138
        %v679 = vmul.f32 %v663, %v599
        %v680 = vmul.f32 %v664, %v600
        %v681 = vmul.f32 %v665, %v601
        %v682 = vmul.f32 %v666, %v602
        %v683 = vmul.f32 %v667, %v603
        %v684 = vmul.f32 %v668, %v604
        %v685 = vmul.f32 %v669, %v605
        %v686 = vmul.f32 %v670, %v606
        %v687 = vmul.f32 %v671, %v607
        %v688 = vmul.f32 %v672, %v608
        %v689 = vmul.f32 %v673, %v609
        %v690 = vmul.f32 %v674, %v610
        %v691 = vmul.f32 %v675, %v611
        %v692 = vmul.f32 %v676, %v612
        %v693 = vmul.f32 %v677, %v613
        %v694 = vmul.f32 %v678, %v614
        %v695 = vadd.f32 %v679, -0.28449672
        %v696 = vadd.f32 %v680, -0.28449672
        %v697 = vadd.f32 %v681, -0.28449672
        %v698 = vadd.f32 %v682, -0.28449672
        %v699 = vadd.f32 %v683, -0.28449672
        %v700 = vadd.f32 %v684, -0.28449672
        %v701 = vadd.f32 %v685, -0.28449672
        %v702 = vadd.f32 %v686, -0.28449672
        %v703 = vadd.f32 %v687, -0.28449672
        %v704 = vadd.f32 %v688, -0.28449672
        %v705 = vadd.f32 %v689, -0.28449672
        %v706 = vadd.f32 %v690, -0.28449672
        %v707 = vadd.f32 %v691, -0.28449672
        %v708 = vadd.f32 %v692, -0.28449672
        %v709 = vadd.f32 %v693, -0.28449672
        %v710 = vadd.f32 %v694, -0.28449672
        %v711 = vmul.f32 %v695, %v599
        %v712 = vmul.f32 %v696, %v600
        %v713 = vmul.f32 %v697, %v601
        %v714 = vmul.f32 %v698, %v602
        %v715 = vmul.f32 %v699, %v603
        %v716 = vmul.f32 %v700, %v604
        %v717 = vmul.f32 %v701, %v605
        %v718 = vmul.f32 %v702, %v606
        %v719 = vmul.f32 %v703, %v607
        %v720 = vmul.f32 %v704, %v608
        %v721 = vmul.f32 %v705, %v609
        %v722 = vmul.f32 %v706, %v610
        %v723 = vmul.f32 %v707, %v611
        %v724 = vmul.f32 %v708, %v612
        %v725 = vmul.f32 %v709, %v613
        %v726 = vmul.f32 %v710, %v614
        %v727 = vadd.f32 %v711, 0.2548296
        %v728 = vadd.f32 %v712, 0.2548296
        %v729 = vadd.f32 %v713, 0.2548296
        %v730 = vadd.f32 %v714, 0.2548296
        %v731 = vadd.f32 %v715, 0.2548296
        %v732 = vadd.f32 %v716, 0.2548296
        %v733 = vadd.f32 %v717, 0.2548296
        %v734 = vadd.f32 %v718, 0.2548296
        %v735 = vadd.f32 %v719, 0.2548296
        %v736 = vadd.f32 %v720, 0.2548296
        %v737 = vadd.f32 %v721, 0.2548296
        %v738 = vadd.f32 %v722, 0.2548296
        %v739 = vadd.f32 %v723, 0.2548296
        %v740 = vadd.f32 %v724, 0.2548296
        %v741 = vadd.f32 %v725, 0.2548296
        %v742 = vadd.f32 %v726, 0.2548296
        %v743 = vmul.f32 %v727, %v599
        %v744 = vmul.f32 %v728, %v600
        %v745 = vmul.f32 %v729, %v601
        %v746 = vmul.f32 %v730, %v602
        %v747 = vmul.f32 %v731, %v603
        %v748 = vmul.f32 %v732, %v604
        %v749 = vmul.f32 %v733, %v605
        %v750 = vmul.f32 %v734, %v606
        %v751 = vmul.f32 %v735, %v607
        %v752 = vmul.f32 %v736, %v608
        %v753 = vmul.f32 %v737, %v609
        %v754 = vmul.f32 %v738, %v610
        %v755 = vmul.f32 %v739, %v611
        %v756 = vmul.f32 %v740, %v612
        %v757 = vmul.f32 %v741, %v613
        %v758 = vmul.f32 %v742, %v614
        %v759 = vsub.f32 0.0, %v551
        %v760 = vsub.f32 0.0, %v552
        %v761 = vsub.f32 0.0, %v553
        %v762 = vsub.f32 0.0, %v554
        %v763 = vsub.f32 0.0, %v555
        %v764 = vsub.f32 0.0, %v556
        %v765 = vsub.f32 0.0, %v557
        %v766 = vsub.f32 0.0, %v558
        %v767 = vsub.f32 0.0, %v559
        %v768 = vsub.f32 0.0, %v560
        %v769 = vsub.f32 0.0, %v561
        %v770 = vsub.f32 0.0, %v562
        %v771 = vsub.f32 0.0, %v563
        %v772 = vsub.f32 0.0, %v564
        %v773 = vsub.f32 0.0, %v565
        %v774 = vsub.f32 0.0, %v566
        %v775 = vmul.f32 %v759, %v551
        %v776 = vmul.f32 %v760, %v552
        %v777 = vmul.f32 %v761, %v553
        %v778 = vmul.f32 %v762, %v554
        %v779 = vmul.f32 %v763, %v555
        %v780 = vmul.f32 %v764, %v556
        %v781 = vmul.f32 %v765, %v557
        %v782 = vmul.f32 %v766, %v558
        %v783 = vmul.f32 %v767, %v559
        %v784 = vmul.f32 %v768, %v560
        %v785 = vmul.f32 %v769, %v561
        %v786 = vmul.f32 %v770, %v562
        %v787 = vmul.f32 %v771, %v563
        %v788 = vmul.f32 %v772, %v564
        %v789 = vmul.f32 %v773, %v565
        %v790 = vmul.f32 %v774, %v566
        %v791 = vmul.f32 %v775, 1.442695
        %v792 = vpow.pop %v791
        %v793 = vmul.f32 %v776, 1.442695
        %v794 = vpow.pop %v793
        %v795 = vmul.f32 %v777, 1.442695
        %v796 = vpow.pop %v795
        %v797 = vmul.f32 %v778, 1.442695
        %v798 = vpow.pop %v797
        %v799 = vmul.f32 %v779, 1.442695
        %v800 = vpow.pop %v799
        %v801 = vmul.f32 %v780, 1.442695
        %v802 = vpow.pop %v801
        %v803 = vmul.f32 %v781, 1.442695
        %v804 = vpow.pop %v803
        %v805 = vmul.f32 %v782, 1.442695
        %v806 = vpow.pop %v805
        %v807 = vmul.f32 %v783, 1.442695
        %v808 = vpow.pop %v807
        %v809 = vmul.f32 %v784, 1.442695
        %v810 = vpow.pop %v809
        %v811 = vmul.f32 %v785, 1.442695
        %v812 = vpow.pop %v811
        %v813 = vmul.f32 %v786, 1.442695
        %v814 = vpow.pop %v813
        %v815 = vmul.f32 %v787, 1.442695
        %v816 = vpow.pop %v815
        %v817 = vmul.f32 %v788, 1.442695
        %v818 = vpow.pop %v817
        %v819 = vmul.f32 %v789, 1.442695
        %v820 = vpow.pop %v819
        %v821 = vmul.f32 %v790, 1.442695
        %v822 = vpow.pop %v821
        %v823 = vmul.f32 %v743, %v792
        %v824 = vmul.f32 %v744, %v794
        %v825 = vmul.f32 %v745, %v796
        %v826 = vmul.f32 %v746, %v798
        %v827 = vmul.f32 %v747, %v800
        %v828 = vmul.f32 %v748, %v802
        %v829 = vmul.f32 %v749, %v804
        %v830 = vmul.f32 %v750, %v806
        %v831 = vmul.f32 %v751, %v808
        %v832 = vmul.f32 %v752, %v810
        %v833 = vmul.f32 %v753, %v812
        %v834 = vmul.f32 %v754, %v814
        %v835 = vmul.f32 %v755, %v816
        %v836 = vmul.f32 %v756, %v818
        %v837 = vmul.f32 %v757, %v820
        %v838 = vmul.f32 %v758, %v822
        %v839 = vsub.f32 1.0, %v823
        %v840 = vsub.f32 1.0, %v824
        %v841 = vsub.f32 1.0, %v825
        %v842 = vsub.f32 1.0, %v826
        %v843 = vsub.f32 1.0, %v827
        %v844 = vsub.f32 1.0, %v828
        %v845 = vsub.f32 1.0, %v829
        %v846 = vsub.f32 1.0, %v830
        %v847 = vsub.f32 1.0, %v831
        %v848 = vsub.f32 1.0, %v832
        %v849 = vsub.f32 1.0, %v833
        %v850 = vsub.f32 1.0, %v834
        %v851 = vsub.f32 1.0, %v835
        %v852 = vsub.f32 1.0, %v836
        %v853 = vsub.f32 1.0, %v837
        %v854 = vsub.f32 1.0, %v838
        %v855 = vmul.f32 %v535, %v839
        %v856 = vmul.f32 %v536, %v840
        %v857 = vmul.f32 %v537, %v841
        %v858 = vmul.f32 %v538, %v842
        %v859 = vmul.f32 %v539, %v843
        %v860 = vmul.f32 %v540, %v844
        %v861 = vmul.f32 %v541, %v845
        %v862 = vmul.f32 %v542, %v846
        %v863 = vmul.f32 %v543, %v847
        %v864 = vmul.f32 %v544, %v848
        %v865 = vmul.f32 %v545, %v849
        %v866 = vmul.f32 %v546, %v850
        %v867 = vmul.f32 %v547, %v851
        %v868 = vmul.f32 %v548, %v852
        %v869 = vmul.f32 %v549, %v853
        %v870 = vmul.f32 %v550, %v854
        %v871 = vadd.f32 %v855, 1.0
        %v872 = vadd.f32 %v856, 1.0
        %v873 = vadd.f32 %v857, 1.0
        %v874 = vadd.f32 %v858, 1.0
        %v875 = vadd.f32 %v859, 1.0
        %v876 = vadd.f32 %v860, 1.0
        %v877 = vadd.f32 %v861, 1.0
        %v878 = vadd.f32 %v862, 1.0
        %v879 = vadd.f32 %v863, 1.0
        %v880 = vadd.f32 %v864, 1.0
        %v881 = vadd.f32 %v865, 1.0
        %v882 = vadd.f32 %v866, 1.0
        %v883 = vadd.f32 %v867, 1.0
        %v884 = vadd.f32 %v868, 1.0
        %v885 = vadd.f32 %v869, 1.0
        %v886 = vadd.f32 %v870, 1.0
        %v887 = vmul.f32 %v487, %v871
        %v888 = vmul.f32 %v488, %v872
        %v889 = vmul.f32 %v489, %v873
        %v890 = vmul.f32 %v490, %v874
        %v891 = vmul.f32 %v491, %v875
        %v892 = vmul.f32 %v492, %v876
        %v893 = vmul.f32 %v493, %v877
        %v894 = vmul.f32 %v494, %v878
        %v895 = vmul.f32 %v495, %v879
        %v896 = vmul.f32 %v496, %v880
        %v897 = vmul.f32 %v497, %v881
        %v898 = vmul.f32 %v498, %v882
        %v899 = vmul.f32 %v499, %v883
        %v900 = vmul.f32 %v500, %v884
        %v901 = vmul.f32 %v501, %v885
        %v902 = vmul.f32 %v502, %v886
        %v903 = vpack.c.bf16 %v889, %v887
        %v904 = vpack.c.bf16 %v890, %v888
        %v905 = vpack.c.bf16 %v893, %v891
        %v906 = vpack.c.bf16 %v894, %v892
        %v907 = vpack.c.bf16 %v897, %v895
        %v908 = vpack.c.bf16 %v898, %v896
        %v909 = vpack.c.bf16 %v901, %v899
        %v910 = vpack.c.bf16 %v902, %v900
        %v911 = vld [vmem:[#allocation8] sm:$0xf]
        %v912 = vld [vmem:[#allocation8 + $0x4] sm:$0xf]
        %v913 = vld [vmem:[#allocation8 + $0x8] sm:$0xf]
        %v914 = vld [vmem:[#allocation8 + $0xc] sm:$0xf]
        %v915 = vld [vmem:[#allocation8 + $0x10] sm:$0xf]
        %v916 = vld [vmem:[#allocation8 + $0x14] sm:$0xf]
        %v917 = vld [vmem:[#allocation8 + $0x18] sm:$0xf]
        %v918 = vld [vmem:[#allocation8 + $0x1c] sm:$0xf]
        %v919 = vld [vmem:[#allocation8 + $0x20] sm:$0xf]
        %v920 = vld [vmem:[#allocation8 + $0x24] sm:$0xf]
        %v921 = vld [vmem:[#allocation8 + $0x28] sm:$0xf]
        %v922 = vld [vmem:[#allocation8 + $0x2c] sm:$0xf]
        %v923 = vld [vmem:[#allocation8 + $0x30] sm:$0xf]
        %v924 = vld [vmem:[#allocation8 + $0x34] sm:$0xf]
        %v925 = vld [vmem:[#allocation8 + $0x38] sm:$0xf]
        %v926 = vld [vmem:[#allocation8 + $0x3c] sm:$0xf]
        %v927 = vld [vmem:[#allocation8 + $0x40] sm:$0xf]
        %v928 = vld [vmem:[#allocation8 + $0x44] sm:$0xf]
        %v929 = vld [vmem:[#allocation8 + $0x48] sm:$0xf]
        %v930 = vld [vmem:[#allocation8 + $0x4c] sm:$0xf]
        %v931 = vld [vmem:[#allocation8 + $0x50] sm:$0xf]
        %v932 = vld [vmem:[#allocation8 + $0x54] sm:$0xf]
        %v933 = vld [vmem:[#allocation8 + $0x58] sm:$0xf]
        %v934 = vld [vmem:[#allocation8 + $0x5c] sm:$0xf]
        %v935 = vld [vmem:[#allocation8 + $0x60] sm:$0xf]
        %v936 = vld [vmem:[#allocation8 + $0x64] sm:$0xf]
        %v937 = vld [vmem:[#allocation8 + $0x68] sm:$0xf]
        %v938 = vld [vmem:[#allocation8 + $0x6c] sm:$0xf]
        %v939 = vld [vmem:[#allocation8 + $0x70] sm:$0xf]
        %v940 = vld [vmem:[#allocation8 + $0x74] sm:$0xf]
        %v941 = vld [vmem:[#allocation8 + $0x78] sm:$0xf]
        %v942 = vld [vmem:[#allocation8 + $0x7c] sm:$0xf]
        %v943 = vld [vmem:[%s4] sm:$0x1]
        %v945 = vperm.slane %v943, 0
        %v979 = vunpack.c.l.b16 %v911
        %v980 = vunpack.c.l.b16 %v912
        %v981 = vunpack.c.l.b16 %v913
        %v982 = vunpack.c.l.b16 %v914
        %v983 = vunpack.c.l.b16 %v915
        %v984 = vunpack.c.l.b16 %v916
        %v985 = vunpack.c.l.b16 %v917
        %v986 = vunpack.c.l.b16 %v918
        %v987 = vunpack.c.l.b16 %v919
        %v988 = vunpack.c.l.b16 %v920
        %v989 = vunpack.c.l.b16 %v921
        %v990 = vunpack.c.l.b16 %v922
        %v991 = vunpack.c.l.b16 %v923
        %v992 = vunpack.c.l.b16 %v924
        %v993 = vunpack.c.l.b16 %v925
        %v994 = vunpack.c.l.b16 %v926
        %v995 = vunpack.c.l.b16 %v927
        %v996 = vunpack.c.l.b16 %v928
        %v997 = vunpack.c.l.b16 %v929
        %v998 = vunpack.c.l.b16 %v930
        %v999 = vunpack.c.l.b16 %v931
        %v1000 = vunpack.c.l.b16 %v932
        %v1001 = vunpack.c.l.b16 %v933
        %v1002 = vunpack.c.l.b16 %v934
        %v1003 = vunpack.c.l.b16 %v935
        %v1004 = vunpack.c.l.b16 %v936
        %v1005 = vunpack.c.l.b16 %v937
        %v1006 = vunpack.c.l.b16 %v938
        %v1007 = vunpack.c.l.b16 %v939
        %v1008 = vunpack.c.l.b16 %v940
        %v1009 = vunpack.c.l.b16 %v941
        %v1010 = vunpack.c.l.b16 %v942
        %v1011 = vpack.c.b16 %v980, %v979
        %v1012 = vpack.c.b16 %v982, %v981
        %v1013 = vpack.c.b16 %v984, %v983
        %v1014 = vpack.c.b16 %v986, %v985
        %v1015 = vpack.c.b16 %v988, %v987
        %v1016 = vpack.c.b16 %v990, %v989
        %v1017 = vpack.c.b16 %v992, %v991
        %v1018 = vpack.c.b16 %v994, %v993
        %v1019 = vpack.c.b16 %v996, %v995
        %v1020 = vpack.c.b16 %v998, %v997
        %v1021 = vpack.c.b16 %v1000, %v999
        %v1022 = vpack.c.b16 %v1002, %v1001
        %v1023 = vpack.c.b16 %v1004, %v1003
        %v1024 = vpack.c.b16 %v1006, %v1005
        %v1025 = vpack.c.b16 %v1008, %v1007
        %v1026 = vpack.c.b16 %v1010, %v1009
        %1043 = vmatpush.bf16.msra.mxu0 %v1018
        %1044 = vmatpush.bf16.msra.mxu0 %v1017
        %1045 = vmatpush.bf16.msra.mxu0 %v1016
        %1046 = vmatpush.bf16.msra.mxu0 %v1015
        %1047 = vmatpush.bf16.msra.mxu0 %v1014
        %1048 = vmatpush.bf16.msra.mxu0 %v1013
        %1049 = vmatpush.bf16.msra.mxu0 %v1012
        %1050 = vmatpush.bf16.msra.mxu0 %v1011
        %1051 = vmatmul.bf16.gmra.mxu0 %v903
        %v1052 = vpop.f32.mrf.mxu0
        %v1053 = vadd.f32 %v945, %v1052
        %v1054 = vpop.f32.mrf.mxu0
        %v1055 = vadd.f32 %v945, %v1054
        %1056 = vmatmul.bf16.gmra.mxu0 %v905
        %v1057 = vpop.f32.mrf.mxu0
        %v1058 = vadd.f32 %v945, %v1057
        %v1059 = vpop.f32.mrf.mxu0
        %v1060 = vadd.f32 %v945, %v1059
        %1061 = vmatmul.bf16.gmra.mxu0 %v907
        %v1062 = vpop.f32.mrf.mxu0
        %v1063 = vadd.f32 %v945, %v1062
        %v1064 = vpop.f32.mrf.mxu0
        %v1065 = vadd.f32 %v945, %v1064
        %1066 = vmatmul.bf16.gmra.mxu0 %v909
        %v1067 = vpop.f32.mrf.mxu0
        %v1068 = vadd.f32 %v945, %v1067
        %v1069 = vpop.f32.mrf.mxu0
        %v1070 = vadd.f32 %v945, %v1069
        %1071 = vdwg.mxu0
        %1072 = vmatpush.bf16.msra.mxu0 %v1026
        %1073 = vmatpush.bf16.msra.mxu0 %v1025
        %1074 = vmatpush.bf16.msra.mxu0 %v1024
        %1075 = vmatpush.bf16.msra.mxu0 %v1023
        %1076 = vmatpush.bf16.msra.mxu0 %v1022
        %1077 = vmatpush.bf16.msra.mxu0 %v1021
        %1078 = vmatpush.bf16.msra.mxu0 %v1020
        %1079 = vmatpush.bf16.msra.mxu0 %v1019
        %1080 = vmatmul.bf16.gmra.mxu0 %v904
        %v1081 = vpop.f32.mrf.mxu0
        %v1082 = vadd.f32 %v1053, %v1081
        %v1083 = vpop.f32.mrf.mxu0
        %v1084 = vadd.f32 %v1055, %v1083
        %1085 = vmatmul.bf16.gmra.mxu0 %v906
        %v1086 = vpop.f32.mrf.mxu0
        %v1087 = vadd.f32 %v1058, %v1086
        %v1088 = vpop.f32.mrf.mxu0
        %v1089 = vadd.f32 %v1060, %v1088
        %1090 = vmatmul.bf16.gmra.mxu0 %v908
        %v1091 = vpop.f32.mrf.mxu0
        %v1092 = vadd.f32 %v1063, %v1091
        %v1093 = vpop.f32.mrf.mxu0
        %v1094 = vadd.f32 %v1065, %v1093
        %1095 = vmatmul.bf16.gmra.mxu0 %v910
        %v1096 = vpop.f32.mrf.mxu0
        %v1097 = vadd.f32 %v1068, %v1096
        %v1098 = vpop.f32.mrf.mxu0
        %v1099 = vadd.f32 %v1070, %v1098
        %1100 = vdwg.mxu0
        %1101 = vst [vmem:[%s292] sm:$0xff] %v1082
        %1102 = vst [vmem:[%s292 + $0x8] sm:$0xff] %v1084
        %1103 = vst [vmem:[%s292 + $0x10] sm:$0xff] %v1087
        %1104 = vst [vmem:[%s292 + $0x18] sm:$0xff] %v1089
        %1105 = vst [vmem:[%s292 + $0x20] sm:$0xff] %v1092
        %1106 = vst [vmem:[%s292 + $0x28] sm:$0xff] %v1094
        %1107 = vst [vmem:[%s292 + $0x30] sm:$0xff] %v1097
        %1108 = vst [vmem:[%s292 + $0x38] sm:$0xff] %v1099
        %s1109 = sand.u32 %s142, 1
        %s1110 = scalar_lea.sflag [#allocation4], %s1109
        %s1111 = sand.u32 %s142, 1
        %s1112 = smul.addr %s1111, 64
        %s1113 = scalar_lea.vmem [#allocation10], %s1112
        // Predicated region
        $region57: #{tpu_custom_call.1} parent=39 // pred_check
          %p1114 = pneg %p152
        $region58: #{tpu_custom_call.1} parent=39 // pred_check_branch
          %1116 = sbr.rel (%p1114) target = $region60
        $region59: #{tpu_custom_call.1} parent=39 // pred_region
          %s1117 = smul.u32 8, %s24
          %1119 = vsyncadd %s1110, 0
          %s1120 = smul.addr %s1117, 8
          %s1121 = scalar_lea.hbm %s5, %s1120
          %s1122 = sshll.u32 %s1113, 4
          %s1123 = int_to_ptr.vmem [resolvable:$true] %s1122
          %s1124 = sshll.u32 %s1121, 4
          %s1125 = int_to_ptr.hbm [resolvable:$true] %s1124
          %1130 = dma.vmem_to_hbm [thread:$0]  %s1123, 1024, %s1125, %s1110, 128, 128, 8
        $region60: #{tpu_custom_call.1} parent=39 // pred_fallthru
          _
      $region40: #{tpu_custom_call.1} parent=5 // pred_fallthru
        _
      %p1131 = scmp.le.s32.totalorder 2, %s19
      // Predicated region
      $region61: #{tpu_custom_call.1} parent=5 // pred_check
        %p1132 = pneg %p1131
      $region62: #{tpu_custom_call.1} parent=5 // pred_check_branch
        %1134 = sbr.rel (%p1132) target = $region64
      $region63: #{tpu_custom_call.1} parent=5 // pred_region
        %s1135 = ssub.s32 %s19, 2
        // Predicated region
        $region65: #{tpu_custom_call.1} parent=63 // pred_check
          %p1136 = pneg %p158
        $region66: #{tpu_custom_call.1} parent=63 // pred_check_branch
          %1138 = sbr.rel (%p1136) target = $region68
        $region67: #{tpu_custom_call.1} parent=63 // pred_region
          %s1139 = sand.u32 %s143, 1
          %s1140 = scalar_lea.sflag [#allocation4], %s1139
          %s1141 = sand.u32 %s143, 1
          %s1142 = smul.addr %s1141, 64
          %s1143 = scalar_lea.vmem [#allocation10], %s1142
          %1145 = dma.done %s1140, 1024
        $region68: #{tpu_custom_call.1} parent=63 // pred_fallthru
          _
      $region64: #{tpu_custom_call.1} parent=5 // pred_fallthru
        _
    $region6: #{tpu_custom_call.1} parent=1 // loop_footer
      %s23 = sadd.s32 1, %s19
    $region7: #{tpu_custom_call.1} parent=1 // loop_footer_branch
      %18 = sbr.rel target = $region3
    $region8: #{tpu_custom_call.1} parent=1 // loop_exit
      _
    %1146 = vsyncpa [#allocation3], 1
    %s1147 = scalar_lea.sflag [#allocation3], 1
    %1148 = vsyncpa %s1147, 1
    %1149 = vsyncpa [#allocation6], 1
    %1150 = vsyncpa [#allocation9], 1
    %1151 = vsyncpa [#allocation4], 1
    %s1152 = scalar_lea.sflag [#allocation4], 1
    %1153 = vsyncpa %s1152, 1

// kernel: tpu_custom_call.1
$region0: #{tpu_custom_call.1}
  #allocation0 [shape = 'u32[]', space=smem, size = 0x4, offset = 0x4, fixed_abs, tag = 'smem constant byte address 0x4 - core index']
  #allocation1 [shape = 'u32[72,128]{1,0:T(1,128)}', space=vmem, size = 0x9000, scoped, tag = 'internal scratch']
  %s0 = inlined_call_operand.hbm [shape: bf16[128,128], index: 0, kind: input, shape index: {}]
  %s1 = inlined_call_operand.hbm [shape: bf16[128,256], index: 1, kind: input, shape index: {}]
  %s2 = inlined_call_operand.hbm [shape: f32[1,256], index: 2, kind: input, shape index: {}]
  %s3 = inlined_call_operand.hbm [shape: bf16[256,128], index: 3, kind: input, shape index: {}]
  %s4 = inlined_call_operand.vmem [shape: f32[1,128], index: 4, kind: input, shape index: {}]
  %s5 = inlined_call_operand.hbm [shape: f32[128,128], index: 5, kind: output, shape index: {}]
  %s6 = sld [smem:[#allocation0]]
  $region69: #{tpu_custom_call.1} parent=0
    _
  %s8 = ssub.s32 1, %s6
  %s9 = scalar_select 0, %s8, %s6
  $region1: #{tpu_custom_call.1} parent=0
    #allocation2 [shape = 'u8[32768]{0}', space=vmem, size = 0x8000, scoped, tag = 'input window, operand 0']
    #allocation3 [shape = 's32[2]{0}', space=sflag, size = 0x8, scoped, tag = 'scoped memory for tpu_custom_call.1']
    #allocation4 [shape = 's32[2]{0}', space=sflag, size = 0x8, scoped, tag = 'scoped memory for tpu_custom_call.1']
    #allocation5 [shape = 'u8[65536]{0}', space=vmem, size = 0x10000, scoped, tag = 'input window, operand 1, single buffered']
    #allocation6 [shape = 's32[1]{0}', space=sflag, size = 0x4, scoped, tag = 'scoped memory for tpu_custom_call.1']
    #allocation7 [shape = 'u8[1024]{0}', space=vmem, size = 0x400, scoped, tag = 'input window, operand 2, single buffered']
    #allocation8 [shape = 'u8[65536]{0}', space=vmem, size = 0x10000, scoped, tag = 'input window, operand 3, single buffered']
    #allocation9 [shape = 's32[1]{0}', space=sflag, size = 0x4, scoped, tag = 'scoped memory for tpu_custom_call.1']
    #allocation10 [shape = 'u8[65536]{0}', space=vmem, size = 0x10000, scoped, tag = 'output window, operand 0']
    %10 = vsyncpa [#allocation3], 0
    %s11 = scalar_lea.sflag [#allocation3], 1
    %12 = vsyncpa %s11, 0
    %13 = vsyncpa [#allocation6], 0
    %14 = vsyncpa [#allocation9], 0
    %15 = vsyncpa [#allocation4], 0
    %s16 = scalar_lea.sflag [#allocation4], 1
    %17 = vsyncpa %s16, 0
    loop: start=0, step=1, limit=4
    $region2: #{tpu_custom_call.1} parent=1 // loop_pre_header
      _
    $region3: #{tpu_custom_call.1} parent=1 // loop_header
      %s19 = sphi 0, %s23
      %p20 = scmp.ge.s32.totalorder %s19, 4
      %s29 = sphi 0, %s31
      %s32 = sphi 0, %s29
      %s33 = sphi 0, %s32
      %s49 = sphi 0, %s33
      %s53 = sphi 0, %s53
      %s55 = sphi 0, %s53
      %s56 = sphi 0, %s55
      %s70 = sphi 0, %s56
      %s74 = sphi 0, %s74
      %s76 = sphi 0, %s74
      %s77 = sphi 0, %s76
      %s91 = sphi 0, %s77
      %s95 = sphi 0, %s95
      %s97 = sphi 0, %s95
      %s98 = sphi 0, %s97
      %s112 = sphi 0, %s98
      %s116 = sphi 0, %s116
      %s118 = sphi 0, %s116
      %s119 = sphi 0, %s118
      %s133 = sphi 0, %s119
      %s139 = sphi 0, %s141
      %s142 = sphi 0, %s139
      %s143 = sphi 0, %s142
      %s159 = sphi 0, %s143
    $region4: #{tpu_custom_call.1} parent=1 // loop_header_branch
      %22 = sbr.rel (%p20) target = $region8
    $region5: #{tpu_custom_call.1} parent=1 // loop_body
      %s24 = ssub.s32 %s19, 1
      %s25 = ssub.s32 %s19, 2
      %s26 = sadd.s32 %s19, 1
      %s27 = ssub.s32 %s19, %s26
      %p28 = scmp.eq.s32.totalorder %s27, 0
      %s30 = sadd.s32 %s29, 1
      %s31 = scalar_select %p28, %s29, %s30
      %p34 = pneg %p28
      %p35 = scmp.eq.s32.totalorder %s19, 1
      %p36 = por %p34, %p35
      %p37 = scmp.ne.s32.totalorder %s29, %s32
      %p38 = scmp.eq.s32.totalorder %s19, 0
      %p39 = por %p37, %p38
      %p40 = scmp.ne.s32.totalorder %s29, %s32
      %p41 = scmp.eq.s32.totalorder %s24, 1
      %p42 = por %p40, %p41
      %p43 = scmp.ne.s32.totalorder %s32, %s33
      %p44 = scmp.eq.s32.totalorder %s24, 0
      %p45 = por %p43, %p44
      %p46 = scmp.ne.s32.totalorder %s32, %s33
      %p47 = scmp.eq.s32.totalorder %s25, 1
      %p48 = por %p46, %p47
      %p50 = scmp.ne.s32.totalorder %s33, %s49
      %p51 = scmp.eq.s32.totalorder %s25, 0
      %p52 = por %p50, %p51
      %s54 = sadd.s32 %s53, 1
      %p57 = scmp.eq.s32.totalorder %s19, 1
      %p58 = scmp.ne.s32.totalorder %s53, %s55
      %p59 = scmp.eq.s32.totalorder %s19, 0
      %p60 = por %p58, %p59
      %p61 = scmp.ne.s32.totalorder %s53, %s55
      %p62 = scmp.eq.s32.totalorder %s24, 1
      %p63 = por %p61, %p62
      %p64 = scmp.ne.s32.totalorder %s55, %s56
      %p65 = scmp.eq.s32.totalorder %s24, 0
      %p66 = por %p64, %p65
      %p67 = scmp.ne.s32.totalorder %s55, %s56
      %p68 = scmp.eq.s32.totalorder %s25, 1
      %p69 = por %p67, %p68
      %p71 = scmp.ne.s32.totalorder %s56, %s70
      %p72 = scmp.eq.s32.totalorder %s25, 0
      %p73 = por %p71, %p72
      %s75 = sadd.s32 %s74, 1
      %p78 = scmp.eq.s32.totalorder %s19, 1
      %p79 = scmp.ne.s32.totalorder %s74, %s76
      %p80 = scmp.eq.s32.totalorder %s19, 0
      %p81 = por %p79, %p80
      %p82 = scmp.ne.s32.totalorder %s74, %s76
      %p83 = scmp.eq.s32.totalorder %s24, 1
      %p84 = por %p82, %p83
      %p85 = scmp.ne.s32.totalorder %s76, %s77
      %p86 = scmp.eq.s32.totalorder %s24, 0
      %p87 = por %p85, %p86
      %p88 = scmp.ne.s32.totalorder %s76, %s77
      %p89 = scmp.eq.s32.totalorder %s25, 1
      %p90 = por %p88, %p89
      %p92 = scmp.ne.s32.totalorder %s77, %s91
      %p93 = scmp.eq.s32.totalorder %s25, 0
      %p94 = por %p92, %p93
      %s96 = sadd.s32 %s95, 1
      %p99 = scmp.eq.s32.totalorder %s19, 1
      %p100 = scmp.ne.s32.totalorder %s95, %s97
      %p101 = scmp.eq.s32.totalorder %s19, 0
      %p102 = por %p100, %p101
      %p103 = scmp.ne.s32.totalorder %s95, %s97
      %p104 = scmp.eq.s32.totalorder %s24, 1
      %p105 = por %p103, %p104
      %p106 = scmp.ne.s32.totalorder %s97, %s98
      %p107 = scmp.eq.s32.totalorder %s24, 0
      %p108 = por %p106, %p107
      %p109 = scmp.ne.s32.totalorder %s97, %s98
      %p110 = scmp.eq.s32.totalorder %s25, 1
      %p111 = por %p109, %p110
      %p113 = scmp.ne.s32.totalorder %s98, %s112
      %p114 = scmp.eq.s32.totalorder %s25, 0
      %p115 = por %p113, %p114
      %s117 = sadd.s32 %s116, 1
      %p120 = scmp.eq.s32.totalorder %s19, 1
      %p121 = scmp.ne.s32.totalorder %s116, %s118
      %p122 = scmp.eq.s32.totalorder %s19, 0
      %p123 = por %p121, %p122
      %p124 = scmp.ne.s32.totalorder %s116, %s118
      %p125 = scmp.eq.s32.totalorder %s24, 1
      %p126 = por %p124, %p125
      %p127 = scmp.ne.s32.totalorder %s118, %s119
      %p128 = scmp.eq.s32.totalorder %s24, 0
      %p129 = por %p127, %p128
      %p130 = scmp.ne.s32.totalorder %s118, %s119
      %p131 = scmp.eq.s32.totalorder %s25, 1
      %p132 = por %p130, %p131
      %p134 = scmp.ne.s32.totalorder %s119, %s133
      %p135 = scmp.eq.s32.totalorder %s25, 0
      %p136 = por %p134, %p135
      %s137 = ssub.s32 %s19, %s26
      %p138 = scmp.eq.s32.totalorder %s137, 0
      %s140 = sadd.s32 %s139, 1
      %s141 = scalar_select %p138, %s139, %s140
      %p144 = pneg %p138
      %p145 = scmp.eq.s32.totalorder %s19, 1
      %p146 = por %p144, %p145
      %p147 = scmp.ne.s32.totalorder %s139, %s142
      %p148 = scmp.eq.s32.totalorder %s19, 0
      %p149 = por %p147, %p148
      %p150 = scmp.ne.s32.totalorder %s139, %s142
      %p151 = scmp.eq.s32.totalorder %s24, 1
      %p152 = por %p150, %p151
      %p153 = scmp.ne.s32.totalorder %s142, %s143
      %p154 = scmp.eq.s32.totalorder %s24, 0
      %p155 = por %p153, %p154
      %p156 = scmp.ne.s32.totalorder %s142, %s143
      %p157 = scmp.eq.s32.totalorder %s25, 1
      %p158 = por %p156, %p157
      %p160 = scmp.ne.s32.totalorder %s143, %s159
      %p161 = scmp.eq.s32.totalorder %s25, 0
      %p162 = por %p160, %p161
      %p163 = scmp.le.s32.totalorder 1, %s19
      %p164 = scmp.lt.s32.totalorder %s19, 3
      %p165 = pnand %p163, %p164
      %p166 = pneg %p165
      // Predicated region
      $region9: #{tpu_custom_call.1} parent=5 // pred_check
        _
      $region10: #{tpu_custom_call.1} parent=5 // pred_check_branch
        %168 = sbr.rel (%p165) target = $region12
      $region11: #{tpu_custom_call.1} parent=5 // pred_region
        %s169 = ssub.s32 %s19, 1
        // Predicated region
        $region13: #{tpu_custom_call.1} parent=11 // pred_check
          %p170 = pneg %p66
        $region14: #{tpu_custom_call.1} parent=11 // pred_check_branch
          %172 = sbr.rel (%p170) target = $region16
        $region15: #{tpu_custom_call.1} parent=11 // pred_region
          %174 = vsyncadd [#allocation6], 0
          %s175 = sshll.u32 %s1, 4
          %s176 = int_to_ptr.hbm [resolvable:$true] %s175
          %s177 = sshll.u32 [#allocation5], 4
          %s178 = int_to_ptr.vmem [resolvable:$true] %s177
          %183 = dma.hbm_to_vmem [thread:$0]  %s176, 2048, %s178, [#allocation6], 128, 128, 8
        $region16: #{tpu_custom_call.1} parent=11 // pred_fallthru
          _
        // Predicated region
        $region17: #{tpu_custom_call.1} parent=11 // pred_check
          %p184 = pneg %p87
        $region18: #{tpu_custom_call.1} parent=11 // pred_check_branch
          %186 = sbr.rel (%p184) target = $region20
        $region19: #{tpu_custom_call.1} parent=11 // pred_region
          %188 = vsyncadd [#allocation6], 0
          %s190 = sshll.u32 %s2, 4
          %s191 = int_to_ptr.hbm [resolvable:$true] %s190
          %s192 = sshll.u32 [#allocation7], 4
          %s193 = int_to_ptr.vmem [resolvable:$true] %s192
          %195 = dma.hbm_to_vmem [thread:$0]  %s191, 32, %s193, [#allocation6]
        $region20: #{tpu_custom_call.1} parent=11 // pred_fallthru
          _
        // Predicated region
        $region21: #{tpu_custom_call.1} parent=11 // pred_check
          %p196 = pneg %p108
        $region22: #{tpu_custom_call.1} parent=11 // pred_check_branch
          %198 = sbr.rel (%p196) target = $region24
        $region23: #{tpu_custom_call.1} parent=11 // pred_region
          %200 = vsyncadd [#allocation9], 0
          %s201 = sshll.u32 %s3, 4
          %s202 = int_to_ptr.hbm [resolvable:$true] %s201
          %s203 = sshll.u32 [#allocation8], 4
          %s204 = int_to_ptr.vmem [resolvable:$true] %s203
          %209 = dma.hbm_to_vmem [thread:$0]  %s202, 2048, %s204, [#allocation9], 64, 64, 4
        $region24: #{tpu_custom_call.1} parent=11 // pred_fallthru
          _
        // Predicated region
        $region25: #{tpu_custom_call.1} parent=11 // pred_check
          %p210 = pneg %p129
        $region26: #{tpu_custom_call.1} parent=11 // pred_check_branch
          %212 = sbr.rel (%p210) target = $region28
        $region27: #{tpu_custom_call.1} parent=11 // pred_region
          _
        $region28: #{tpu_custom_call.1} parent=11 // pred_fallthru
          _
      $region12: #{tpu_custom_call.1} parent=5 // pred_fallthru
        _
      %p213 = scmp.lt.s32.totalorder %s19, 2
      // Predicated region
      $region29: #{tpu_custom_call.1} parent=5 // pred_check
        %p214 = pneg %p213
      $region30: #{tpu_custom_call.1} parent=5 // pred_check_branch
        %216 = sbr.rel (%p214) target = $region32
      $region31: #{tpu_custom_call.1} parent=5 // pred_region
        // Predicated region
        $region33: #{tpu_custom_call.1} parent=31 // pred_check
          %p217 = pneg %p39
        $region34: #{tpu_custom_call.1} parent=31 // pred_check_branch
          %219 = sbr.rel (%p217) target = $region36
        $region35: #{tpu_custom_call.1} parent=31 // pred_region
          %s220 = sand.u32 %s29, 1
          %s221 = scalar_lea.sflag [#allocation3], %s220
          %s222 = sand.u32 %s29, 1
          %s223 = smul.addr %s222, 32
          %s224 = scalar_lea.vmem [#allocation2], %s223
          %s225 = smul.u32 8, %s19
          %227 = vsyncadd %s221, 0
          %s228 = smul.addr %s225, 4
          %s229 = scalar_lea.hbm %s0, %s228
          %s230 = sshll.u32 %s229, 4
          %s231 = int_to_ptr.hbm [resolvable:$true] %s230
          %s232 = sshll.u32 %s224, 4
          %s233 = int_to_ptr.vmem [resolvable:$true] %s232
          %238 = dma.hbm_to_vmem [thread:$0]  %s231, 512, %s233, %s221, 64, 64, 4
        $region36: #{tpu_custom_call.1} parent=31 // pred_fallthru
          _
      $region32: #{tpu_custom_call.1} parent=5 // pred_fallthru
        _
      %p239 = scmp.le.s32.totalorder 1, %s19
      %p240 = scmp.lt.s32.totalorder %s19, 3
      %p241 = pnand %p239, %p240
      %p242 = pneg %p241
      // Predicated region
      $region37: #{tpu_custom_call.1} parent=5 // pred_check
        _
      $region38: #{tpu_custom_call.1} parent=5 // pred_check_branch
        %244 = sbr.rel (%p241) target = $region40
      $region39: #{tpu_custom_call.1} parent=5 // pred_region
        %s245 = ssub.s32 %s19, 1
        %s246 = sand.u32 %s32, 1
        %s247 = scalar_lea.sflag [#allocation3], %s246
        %s248 = sand.u32 %s32, 1
        %s249 = smul.addr %s248, 32
        %s250 = scalar_lea.vmem [#allocation2], %s249
        // Predicated region
        $region41: #{tpu_custom_call.1} parent=39 // pred_check
          %p251 = pneg %p45
        $region42: #{tpu_custom_call.1} parent=39 // pred_check_branch
          %253 = sbr.rel (%p251) target = $region44
        $region43: #{tpu_custom_call.1} parent=39 // pred_region
          %255 = dma.done %s247, 512
        $region44: #{tpu_custom_call.1} parent=39 // pred_fallthru
          _
        // Predicated region
        $region45: #{tpu_custom_call.1} parent=39 // pred_check
          %p256 = pneg %p66
        $region46: #{tpu_custom_call.1} parent=39 // pred_check_branch
          %258 = sbr.rel (%p256) target = $region48
        $region47: #{tpu_custom_call.1} parent=39 // pred_region
          %260 = dma.done [#allocation6], 2048
        $region48: #{tpu_custom_call.1} parent=39 // pred_fallthru
          _
        // Predicated region
        $region49: #{tpu_custom_call.1} parent=39 // pred_check
          %p261 = pneg %p87
        $region50: #{tpu_custom_call.1} parent=39 // pred_check_branch
          %263 = sbr.rel (%p261) target = $region52
        $region51: #{tpu_custom_call.1} parent=39 // pred_region
          %265 = dma.done [#allocation6], 32
        $region52: #{tpu_custom_call.1} parent=39 // pred_fallthru
          _
        // Predicated region
        $region53: #{tpu_custom_call.1} parent=39 // pred_check
          %p266 = pneg %p108
        $region54: #{tpu_custom_call.1} parent=39 // pred_check_branch
          %268 = sbr.rel (%p266) target = $region56
        $region55: #{tpu_custom_call.1} parent=39 // pred_region
          %270 = dma.done [#allocation9], 2048
        $region56: #{tpu_custom_call.1} parent=39 // pred_fallthru
          _
        %s271 = sand.u32 %s32, 1
        %s272 = scalar_lea.sflag [#allocation3], %s271
        %s273 = sand.u32 %s32, 1
        %s274 = smul.addr %s273, 32
        %s275 = scalar_lea.vmem [#allocation2], %s274
        %p276 = pneg %p45
        %p277 = pneg %p42
        %p278 = pneg %p66
        %p279 = pneg %p63
        %p280 = pneg %p87
        %p281 = pneg %p84
        %p282 = pneg %p108
        %p283 = pneg %p105
        %p284 = pneg %p129
        %p285 = pneg %p126
        %p286 = pneg %p155
        %p287 = pneg %p152
        %s288 = sand.u32 %s142, 1
        %s289 = scalar_lea.sflag [#allocation4], %s288
        %s290 = sand.u32 %s142, 1
        %s291 = smul.addr %s290, 64
        %s292 = scalar_lea.vmem [#allocation10], %s291
        %s293 = smul.u32 8, %s24
        %s294 = smul.u32 8, %s24
        %v295 = vld [vmem:[%s250] sm:$0xf]
        %v296 = vld [vmem:[%s250 + $0x4] sm:$0xf]
        %v297 = vld [vmem:[%s250 + $0x8] sm:$0xf]
        %v298 = vld [vmem:[%s250 + $0xc] sm:$0xf]
        %v299 = vld [vmem:[%s250 + $0x10] sm:$0xf]
        %v300 = vld [vmem:[%s250 + $0x14] sm:$0xf]
        %v301 = vld [vmem:[%s250 + $0x18] sm:$0xf]
        %v302 = vld [vmem:[%s250 + $0x1c] sm:$0xf]
        %v303 = vld [vmem:[#allocation5] sm:$0xff]
        %v304 = vld [vmem:[#allocation5 + $0x8] sm:$0xff]
        %v305 = vld [vmem:[#allocation5 + $0x10] sm:$0xff]
        %v306 = vld [vmem:[#allocation5 + $0x18] sm:$0xff]
        %v307 = vld [vmem:[#allocation5 + $0x20] sm:$0xff]
        %v308 = vld [vmem:[#allocation5 + $0x28] sm:$0xff]
        %v309 = vld [vmem:[#allocation5 + $0x30] sm:$0xff]
        %v310 = vld [vmem:[#allocation5 + $0x38] sm:$0xff]
        %v311 = vld [vmem:[#allocation5 + $0x40] sm:$0xff]
        %v312 = vld [vmem:[#allocation5 + $0x48] sm:$0xff]
        %v313 = vld [vmem:[#allocation5 + $0x50] sm:$0xff]
        %v314 = vld [vmem:[#allocation5 + $0x58] sm:$0xff]
        %v315 = vld [vmem:[#allocation5 + $0x60] sm:$0xff]
        %v316 = vld [vmem:[#allocation5 + $0x68] sm:$0xff]
        %v317 = vld [vmem:[#allocation5 + $0x70] sm:$0xff]
        %v318 = vld [vmem:[#allocation5 + $0x78] sm:$0xff]
        %v319 = vld [vmem:[#allocation7] sm:$0x3]
        %v321 = vperm.slane %v319, 0
        %v322 = vperm.slane %v319, 1
        %v333 = vunpack.c.l.b16 %v295
        %v334 = vunpack.c.l.b16 %v296
        %v335 = vunpack.c.l.b16 %v297
        %v336 = vunpack.c.l.b16 %v298
        %v337 = vunpack.c.l.b16 %v299
        %v338 = vunpack.c.l.b16 %v300
        %v339 = vunpack.c.l.b16 %v301
        %v340 = vunpack.c.l.b16 %v302
        %v341 = vpack.c.b16 %v334, %v333
        %v342 = vpack.c.b16 %v336, %v335
        %v343 = vpack.c.b16 %v338, %v337
        %v344 = vpack.c.b16 %v340, %v339
        %v365 = vunpack.c.l.b16 %v303
        %v366 = vunpack.c.h.b16 %v303
        %v367 = vunpack.c.l.b16 %v304
        %v368 = vunpack.c.h.b16 %v304
        %v369 = vunpack.c.l.b16 %v305
        %v370 = vunpack.c.h.b16 %v305
        %v371 = vunpack.c.l.b16 %v306
        %v372 = vunpack.c.h.b16 %v306
        %v373 = vunpack.c.l.b16 %v307
        %v374 = vunpack.c.h.b16 %v307
        %v375 = vunpack.c.l.b16 %v308
        %v376 = vunpack.c.h.b16 %v308
        %v377 = vunpack.c.l.b16 %v309
        %v378 = vunpack.c.h.b16 %v309
        %v379 = vunpack.c.l.b16 %v310
        %v380 = vunpack.c.h.b16 %v310
        %v381 = vunpack.c.l.b16 %v311
        %v382 = vunpack.c.h.b16 %v311
        %v383 = vunpack.c.l.b16 %v312
        %v384 = vunpack.c.h.b16 %v312
        %v385 = vunpack.c.l.b16 %v313
        %v386 = vunpack.c.h.b16 %v313
        %v387 = vunpack.c.l.b16 %v314
        %v388 = vunpack.c.h.b16 %v314
        %v389 = vunpack.c.l.b16 %v315
        %v390 = vunpack.c.h.b16 %v315
        %v391 = vunpack.c.l.b16 %v316
        %v392 = vunpack.c.h.b16 %v316
        %v393 = vunpack.c.l.b16 %v317
        %v394 = vunpack.c.h.b16 %v317
        %v395 = vunpack.c.l.b16 %v318
        %v396 = vunpack.c.h.b16 %v318
        %v397 = vpack.c.b16 %v367, %v365
        %v398 = vpack.c.b16 %v368, %v366
        %v399 = vpack.c.b16 %v371, %v369
        %v400 = vpack.c.b16 %v372, %v370
        %v401 = vpack.c.b16 %v375, %v373
        %v402 = vpack.c.b16 %v376, %v374
        %v403 = vpack.c.b16 %v379, %v377
        %v404 = vpack.c.b16 %v380, %v378
        %v405 = vpack.c.b16 %v383, %v381
        %v406 = vpack.c.b16 %v384, %v382
        %v407 = vpack.c.b16 %v387, %v385
        %v408 = vpack.c.b16 %v388, %v386
        %v409 = vpack.c.b16 %v391, %v389
        %v410 = vpack.c.b16 %v392, %v390
        %v411 = vpack.c.b16 %v395, %v393
        %v412 = vpack.c.b16 %v396, %v394
        %429 = vmatpush.bf16.msra.mxu0 %v411
        %430 = vmatpush.bf16.msra.mxu0 %v409
        %431 = vmatpush.bf16.msra.mxu0 %v407
        %432 = vmatpush.bf16.msra.mxu0 %v405
        %433 = vmatpush.bf16.msra.mxu0 %v403
        %434 = vmatpush.bf16.msra.mxu0 %v401
        %435 = vmatpush.bf16.msra.mxu0 %v399
        %436 = vmatpush.bf16.msra.mxu0 %v397
        %437 = vmatmul.bf16.gmra.mxu0 %v341
        %v438 = vpop.f32.mrf.mxu0
        %v439 = vadd.f32 %v321, %v438
        %v440 = vpop.f32.mrf.mxu0
        %v441 = vadd.f32 %v321, %v440
        %442 = vmatmul.bf16.gmra.mxu0 %v342
        %v443 = vpop.f32.mrf.mxu0
        %v444 = vadd.f32 %v321, %v443
        %v445 = vpop.f32.mrf.mxu0
        %v446 = vadd.f32 %v321, %v445
        %447 = vmatmul.bf16.gmra.mxu0 %v343
        %v448 = vpop.f32.mrf.mxu0
        %v449 = vadd.f32 %v321, %v448
        %v450 = vpop.f32.mrf.mxu0
        %v451 = vadd.f32 %v321, %v450
        %452 = vmatmul.bf16.gmra.mxu0 %v344
        %v453 = vpop.f32.mrf.mxu0
        %v454 = vadd.f32 %v321, %v453
        %v455 = vpop.f32.mrf.mxu0
        %v456 = vadd.f32 %v321, %v455
        %457 = vdwg.mxu0
        %458 = vmatpush.bf16.msra.mxu0 %v412
        %459 = vmatpush.bf16.msra.mxu0 %v410
        %460 = vmatpush.bf16.msra.mxu0 %v408
        %461 = vmatpush.bf16.msra.mxu0 %v406
        %462 = vmatpush.bf16.msra.mxu0 %v404
        %463 = vmatpush.bf16.msra.mxu0 %v402
        %464 = vmatpush.bf16.msra.mxu0 %v400
        %465 = vmatpush.bf16.msra.mxu0 %v398
        %466 = vmatmul.bf16.gmra.mxu0 %v341
        %v467 = vpop.f32.mrf.mxu0
        %v468 = vadd.f32 %v322, %v467
        %v469 = vpop.f32.mrf.mxu0
        %v470 = vadd.f32 %v322, %v469
        %471 = vmatmul.bf16.gmra.mxu0 %v342
        %v472 = vpop.f32.mrf.mxu0
        %v473 = vadd.f32 %v322, %v472
        %v474 = vpop.f32.mrf.mxu0
        %v475 = vadd.f32 %v322, %v474
        %476 = vmatmul.bf16.gmra.mxu0 %v343
        %v477 = vpop.f32.mrf.mxu0
        %v478 = vadd.f32 %v322, %v477
        %v479 = vpop.f32.mrf.mxu0
        %v480 = vadd.f32 %v322, %v479
        %481 = vmatmul.bf16.gmra.mxu0 %v344
        %v482 = vpop.f32.mrf.mxu0
        %v483 = vadd.f32 %v322, %v482
        %v484 = vpop.f32.mrf.mxu0
        %v485 = vadd.f32 %v322, %v484
        %486 = vdwg.mxu0
        %v487 = vmul.f32 %v439, 0.5
        %v488 = vmul.f32 %v468, 0.5
        %v489 = vmul.f32 %v441, 0.5
        %v490 = vmul.f32 %v470, 0.5
        %v491 = vmul.f32 %v444, 0.5
        %v492 = vmul.f32 %v473, 0.5
        %v493 = vmul.f32 %v446, 0.5
        %v494 = vmul.f32 %v475, 0.5
        %v495 = vmul.f32 %v449, 0.5
        %v496 = vmul.f32 %v478, 0.5
        %v497 = vmul.f32 %v451, 0.5
        %v498 = vmul.f32 %v480, 0.5
        %v499 = vmul.f32 %v454, 0.5
        %v500 = vmul.f32 %v483, 0.5
        %v501 = vmul.f32 %v456, 0.5
        %v502 = vmul.f32 %v485, 0.5
        %v503 = vmul.f32 %v439, 0.70710677
        %v504 = vmul.f32 %v468, 0.70710677
        %v505 = vmul.f32 %v441, 0.70710677
        %v506 = vmul.f32 %v470, 0.70710677
        %v507 = vmul.f32 %v444, 0.70710677
        %v508 = vmul.f32 %v473, 0.70710677
        %v509 = vmul.f32 %v446, 0.70710677
        %v510 = vmul.f32 %v475, 0.70710677
        %v511 = vmul.f32 %v449, 0.70710677
        %v512 = vmul.f32 %v478, 0.70710677
        %v513 = vmul.f32 %v451, 0.70710677
        %v514 = vmul.f32 %v480, 0.70710677
        %v515 = vmul.f32 %v454, 0.70710677
        %v516 = vmul.f32 %v483, 0.70710677
        %v517 = vmul.f32 %v456, 0.70710677
        %v518 = vmul.f32 %v485, 0.70710677
        %vm519 = vcmp.ge.f32.partialorder %v503, 0.0
        %vm520 = vcmp.ge.f32.partialorder %v504, 0.0
        %vm521 = vcmp.ge.f32.partialorder %v505, 0.0
        %vm522 = vcmp.ge.f32.partialorder %v506, 0.0
        %vm523 = vcmp.ge.f32.partialorder %v507, 0.0
        %vm524 = vcmp.ge.f32.partialorder %v508, 0.0
        %vm525 = vcmp.ge.f32.partialorder %v509, 0.0
        %vm526 = vcmp.ge.f32.partialorder %v510, 0.0
        %vm527 = vcmp.ge.f32.partialorder %v511, 0.0
        %vm528 = vcmp.ge.f32.partialorder %v512, 0.0
        %vm529 = vcmp.ge.f32.partialorder %v513, 0.0
        %vm530 = vcmp.ge.f32.partialorder %v514, 0.0
        %vm531 = vcmp.ge.f32.partialorder %v515, 0.0
        %vm532 = vcmp.ge.f32.partialorder %v516, 0.0
        %vm533 = vcmp.ge.f32.partialorder %v517, 0.0
        %vm534 = vcmp.ge.f32.partialorder %v518, 0.0
        %v535 = vsel %vm519, 1.0, -1.0
        %v536 = vsel %vm520, 1.0, -1.0
        %v537 = vsel %vm521, 1.0, -1.0
        %v538 = vsel %vm522, 1.0, -1.0
        %v539 = vsel %vm523, 1.0, -1.0
        %v540 = vsel %vm524, 1.0, -1.0
        %v541 = vsel %vm525, 1.0, -1.0
        %v542 = vsel %vm526, 1.0, -1.0
        %v543 = vsel %vm527, 1.0, -1.0
        %v544 = vsel %vm528, 1.0, -1.0
        %v545 = vsel %vm529, 1.0, -1.0
        %v546 = vsel %vm530, 1.0, -1.0
        %v547 = vsel %vm531, 1.0, -1.0
        %v548 = vsel %vm532, 1.0, -1.0
        %v549 = vsel %vm533, 1.0, -1.0
        %v550 = vsel %vm534, 1.0, -1.0
        %v551 = vand.u32 2147483647, %v503
        %v552 = vand.u32 2147483647, %v504
        %v553 = vand.u32 2147483647, %v505
        %v554 = vand.u32 2147483647, %v506
        %v555 = vand.u32 2147483647, %v507
        %v556 = vand.u32 2147483647, %v508
        %v557 = vand.u32 2147483647, %v509
        %v558 = vand.u32 2147483647, %v510
        %v559 = vand.u32 2147483647, %v511
        %v560 = vand.u32 2147483647, %v512
        %v561 = vand.u32 2147483647, %v513
        %v562 = vand.u32 2147483647, %v514
        %v563 = vand.u32 2147483647, %v515
        %v564 = vand.u32 2147483647, %v516
        %v565 = vand.u32 2147483647, %v517
        %v566 = vand.u32 2147483647, %v518
        %v567 = vmul.f32 %v551, 0.3275911
        %v568 = vmul.f32 %v552, 0.3275911
        %v569 = vmul.f32 %v553, 0.3275911
        %v570 = vmul.f32 %v554, 0.3275911
        %v571 = vmul.f32 %v555, 0.3275911
        %v572 = vmul.f32 %v556, 0.3275911
        %v573 = vmul.f32 %v557, 0.3275911
        %v574 = vmul.f32 %v558, 0.3275911
        %v575 = vmul.f32 %v559, 0.3275911
        %v576 = vmul.f32 %v560, 0.3275911
        %v577 = vmul.f32 %v561, 0.3275911
        %v578 = vmul.f32 %v562, 0.3275911
        %v579 = vmul.f32 %v563, 0.3275911
        %v580 = vmul.f32 %v564, 0.3275911
        %v581 = vmul.f32 %v565, 0.3275911
        %v582 = vmul.f32 %v566, 0.3275911
        %v583 = vadd.f32 %v567, 1.0
        %v584 = vadd.f32 %v568, 1.0
        %v585 = vadd.f32 %v569, 1.0
        %v586 = vadd.f32 %v570, 1.0
        %v587 = vadd.f32 %v571, 1.0
        %v588 = vadd.f32 %v572, 1.0
        %v589 = vadd.f32 %v573, 1.0
        %v590 = vadd.f32 %v574, 1.0
        %v591 = vadd.f32 %v575, 1.0
        %v592 = vadd.f32 %v576, 1.0
        %v593 = vadd.f32 %v577, 1.0
        %v594 = vadd.f32 %v578, 1.0
        %v595 = vadd.f32 %v579, 1.0
        %v596 = vadd.f32 %v580, 1.0
        %v597 = vadd.f32 %v581, 1.0
        %v598 = vadd.f32 %v582, 1.0
        %v599 = vrcp.pop %v583
        %v600 = vrcp.pop %v584
        %v601 = vrcp.pop %v585
        %v602 = vrcp.pop %v586
        %v603 = vrcp.pop %v587
        %v604 = vrcp.pop %v588
        %v605 = vrcp.pop %v589
        %v606 = vrcp.pop %v590
        %v607 = vrcp.pop %v591
        %v608 = vrcp.pop %v592
        %v609 = vrcp.pop %v593
        %v610 = vrcp.pop %v594
        %v611 = vrcp.pop %v595
        %v612 = vrcp.pop %v596
        %v613 = vrcp.pop %v597
        %v614 = vrcp.pop %v598
        %v615 = vmul.f32 %v599, 1.0614054
        %v616 = vmul.f32 %v600, 1.0614054
        %v617 = vmul.f32 %v601, 1.0614054
        %v618 = vmul.f32 %v602, 1.0614054
        %v619 = vmul.f32 %v603, 1.0614054
        %v620 = vmul.f32 %v604, 1.0614054
        %v621 = vmul.f32 %v605, 1.0614054
        %v622 = vmul.f32 %v606, 1.0614054
        %v623 = vmul.f32 %v607, 1.0614054
        %v624 = vmul.f32 %v608, 1.0614054
        %v625 = vmul.f32 %v609, 1.0614054
        %v626 = vmul.f32 %v610, 1.0614054
        %v627 = vmul.f32 %v611, 1.0614054
        %v628 = vmul.f32 %v612, 1.0614054
        %v629 = vmul.f32 %v613, 1.0614054
        %v630 = vmul.f32 %v614, 1.0614054
        %v631 = vadd.f32 %v615, -1.4531521
        %v632 = vadd.f32 %v616, -1.4531521
        %v633 = vadd.f32 %v617, -1.4531521
        %v634 = vadd.f32 %v618, -1.4531521
        %v635 = vadd.f32 %v619, -1.4531521
        %v636 = vadd.f32 %v620, -1.4531521
        %v637 = vadd.f32 %v621, -1.4531521
        %v638 = vadd.f32 %v622, -1.4531521
        %v639 = vadd.f32 %v623, -1.4531521
        %v640 = vadd.f32 %v624, -1.4531521
        %v641 = vadd.f32 %v625, -1.4531521
        %v642 = vadd.f32 %v626, -1.4531521
        %v643 = vadd.f32 %v627, -1.4531521
        %v644 = vadd.f32 %v628, -1.4531521
        %v645 = vadd.f32 %v629, -1.4531521
        %v646 = vadd.f32 %v630, -1.4531521
        %v647 = vmul.f32 %v631, %v599
        %v648 = vmul.f32 %v632, %v600
        %v649 = vmul.f32 %v633, %v601
        %v650 = vmul.f32 %v634, %v602
        %v651 = vmul.f32 %v635, %v603
        %v652 = vmul.f32 %v636, %v604
        %v653 = vmul.f32 %v637, %v605
        %v654 = vmul.f32 %v638, %v606
        %v655 = vmul.f32 %v639, %v607
        %v656 = vmul.f32 %v640, %v608
        %v657 = vmul.f32 %v641, %v609
        %v658 = vmul.f32 %v642, %v610
        %v659 = vmul.f32 %v643, %v611
        %v660 = vmul.f32 %v644, %v612
        %v661 = vmul.f32 %v645, %v613
        %v662 = vmul.f32 %v646, %v614
        %v663 = vadd.f32 %v647, 1.4214138
        %v664 = vadd.f32 %v648, 1.4214138
        %v665 = vadd.f32 %v649, 1.4214138
        %v666 = vadd.f32 %v650, 1.4214138
        %v667 = vadd.f32 %v651, 1.4214138
        %v668 = vadd.f32 %v652, 1.4214138
        %v669 = vadd.f32 %v653, 1.4214138
        %v670 = vadd.f32 %v654, 1.4214138
        %v671 = vadd.f32 %v655, 1.4214138
        %v672 = vadd.f32 %v656, 1.4214138
        %v673 = vadd.f32 %v657, 1.4214138
        %v674 = vadd.f32 %v658, 1.4214138
        %v675 = vadd.f32 %v659, 1.4214138
        %v676 = vadd.f32 %v660, 1.4214138
        %v677 = vadd.f32 %v661, 1.4214138
        %v678 = vadd.f32 %v662, 1.4214138
        %v679 = vmul.f32 %v663, %v599
        %v680 = vmul.f32 %v664, %v600
        %v681 = vmul.f32 %v665, %v601
        %v682 = vmul.f32 %v666, %v602
        %v683 = vmul.f32 %v667, %v603
        %v684 = vmul.f32 %v668, %v604
        %v685 = vmul.f32 %v669, %v605
        %v686 = vmul.f32 %v670, %v606
        %v687 = vmul.f32 %v671, %v607
        %v688 = vmul.f32 %v672, %v608
        %v689 = vmul.f32 %v673, %v609
        %v690 = vmul.f32 %v674, %v610
        %v691 = vmul.f32 %v675, %v611
        %v692 = vmul.f32 %v676, %v612
        %v693 = vmul.f32 %v677, %v613
        %v694 = vmul.f32 %v678, %v614
        %v695 = vadd.f32 %v679, -0.28449672
        %v696 = vadd.f32 %v680, -0.28449672
        %v697 = vadd.f32 %v681, -0.28449672
        %v698 = vadd.f32 %v682, -0.28449672
        %v699 = vadd.f32 %v683, -0.28449672
        %v700 = vadd.f32 %v684, -0.28449672
        %v701 = vadd.f32 %v685, -0.28449672
        %v702 = vadd.f32 %v686, -0.28449672
        %v703 = vadd.f32 %v687, -0.28449672
        %v704 = vadd.f32 %v688, -0.28449672
        %v705 = vadd.f32 %v689, -0.28449672
        %v706 = vadd.f32 %v690, -0.28449672
        %v707 = vadd.f32 %v691, -0.28449672
        %v708 = vadd.f32 %v692, -0.28449672
        %v709 = vadd.f32 %v693, -0.28449672
        %v710 = vadd.f32 %v694, -0.28449672
        %v711 = vmul.f32 %v695, %v599
        %v712 = vmul.f32 %v696, %v600
        %v713 = vmul.f32 %v697, %v601
        %v714 = vmul.f32 %v698, %v602
        %v715 = vmul.f32 %v699, %v603
        %v716 = vmul.f32 %v700, %v604
        %v717 = vmul.f32 %v701, %v605
        %v718 = vmul.f32 %v702, %v606
        %v719 = vmul.f32 %v703, %v607
        %v720 = vmul.f32 %v704, %v608
        %v721 = vmul.f32 %v705, %v609
        %v722 = vmul.f32 %v706, %v610
        %v723 = vmul.f32 %v707, %v611
        %v724 = vmul.f32 %v708, %v612
        %v725 = vmul.f32 %v709, %v613
        %v726 = vmul.f32 %v710, %v614
        %v727 = vadd.f32 %v711, 0.2548296
        %v728 = vadd.f32 %v712, 0.2548296
        %v729 = vadd.f32 %v713, 0.2548296
        %v730 = vadd.f32 %v714, 0.2548296
        %v731 = vadd.f32 %v715, 0.2548296
        %v732 = vadd.f32 %v716, 0.2548296
        %v733 = vadd.f32 %v717, 0.2548296
        %v734 = vadd.f32 %v718, 0.2548296
        %v735 = vadd.f32 %v719, 0.2548296
        %v736 = vadd.f32 %v720, 0.2548296
        %v737 = vadd.f32 %v721, 0.2548296
        %v738 = vadd.f32 %v722, 0.2548296
        %v739 = vadd.f32 %v723, 0.2548296
        %v740 = vadd.f32 %v724, 0.2548296
        %v741 = vadd.f32 %v725, 0.2548296
        %v742 = vadd.f32 %v726, 0.2548296
        %v743 = vmul.f32 %v727, %v599
        %v744 = vmul.f32 %v728, %v600
        %v745 = vmul.f32 %v729, %v601
        %v746 = vmul.f32 %v730, %v602
        %v747 = vmul.f32 %v731, %v603
        %v748 = vmul.f32 %v732, %v604
        %v749 = vmul.f32 %v733, %v605
        %v750 = vmul.f32 %v734, %v606
        %v751 = vmul.f32 %v735, %v607
        %v752 = vmul.f32 %v736, %v608
        %v753 = vmul.f32 %v737, %v609
        %v754 = vmul.f32 %v738, %v610
        %v755 = vmul.f32 %v739, %v611
        %v756 = vmul.f32 %v740, %v612
        %v757 = vmul.f32 %v741, %v613
        %v758 = vmul.f32 %v742, %v614
        %v759 = vsub.f32 0.0, %v551
        %v760 = vsub.f32 0.0, %v552
        %v761 = vsub.f32 0.0, %v553
        %v762 = vsub.f32 0.0, %v554
        %v763 = vsub.f32 0.0, %v555
        %v764 = vsub.f32 0.0, %v556
        %v765 = vsub.f32 0.0, %v557
        %v766 = vsub.f32 0.0, %v558
        %v767 = vsub.f32 0.0, %v559
        %v768 = vsub.f32 0.0, %v560
        %v769 = vsub.f32 0.0, %v561
        %v770 = vsub.f32 0.0, %v562
        %v771 = vsub.f32 0.0, %v563
        %v772 = vsub.f32 0.0, %v564
        %v773 = vsub.f32 0.0, %v565
        %v774 = vsub.f32 0.0, %v566
        %v775 = vmul.f32 %v759, %v551
        %v776 = vmul.f32 %v760, %v552
        %v777 = vmul.f32 %v761, %v553
        %v778 = vmul.f32 %v762, %v554
        %v779 = vmul.f32 %v763, %v555
        %v780 = vmul.f32 %v764, %v556
        %v781 = vmul.f32 %v765, %v557
        %v782 = vmul.f32 %v766, %v558
        %v783 = vmul.f32 %v767, %v559
        %v784 = vmul.f32 %v768, %v560
        %v785 = vmul.f32 %v769, %v561
        %v786 = vmul.f32 %v770, %v562
        %v787 = vmul.f32 %v771, %v563
        %v788 = vmul.f32 %v772, %v564
        %v789 = vmul.f32 %v773, %v565
        %v790 = vmul.f32 %v774, %v566
        %v791 = vmul.f32 %v775, 1.442695
        %v792 = vpow.pop %v791
        %v793 = vmul.f32 %v776, 1.442695
        %v794 = vpow.pop %v793
        %v795 = vmul.f32 %v777, 1.442695
        %v796 = vpow.pop %v795
        %v797 = vmul.f32 %v778, 1.442695
        %v798 = vpow.pop %v797
        %v799 = vmul.f32 %v779, 1.442695
        %v800 = vpow.pop %v799
        %v801 = vmul.f32 %v780, 1.442695
        %v802 = vpow.pop %v801
        %v803 = vmul.f32 %v781, 1.442695
        %v804 = vpow.pop %v803
        %v805 = vmul.f32 %v782, 1.442695
        %v806 = vpow.pop %v805
        %v807 = vmul.f32 %v783, 1.442695
        %v808 = vpow.pop %v807
        %v809 = vmul.f32 %v784, 1.442695
        %v810 = vpow.pop %v809
        %v811 = vmul.f32 %v785, 1.442695
        %v812 = vpow.pop %v811
        %v813 = vmul.f32 %v786, 1.442695
        %v814 = vpow.pop %v813
        %v815 = vmul.f32 %v787, 1.442695
        %v816 = vpow.pop %v815
        %v817 = vmul.f32 %v788, 1.442695
        %v818 = vpow.pop %v817
        %v819 = vmul.f32 %v789, 1.442695
        %v820 = vpow.pop %v819
        %v821 = vmul.f32 %v790, 1.442695
        %v822 = vpow.pop %v821
        %v823 = vmul.f32 %v743, %v792
        %v824 = vmul.f32 %v744, %v794
        %v825 = vmul.f32 %v745, %v796
        %v826 = vmul.f32 %v746, %v798
        %v827 = vmul.f32 %v747, %v800
        %v828 = vmul.f32 %v748, %v802
        %v829 = vmul.f32 %v749, %v804
        %v830 = vmul.f32 %v750, %v806
        %v831 = vmul.f32 %v751, %v808
        %v832 = vmul.f32 %v752, %v810
        %v833 = vmul.f32 %v753, %v812
        %v834 = vmul.f32 %v754, %v814
        %v835 = vmul.f32 %v755, %v816
        %v836 = vmul.f32 %v756, %v818
        %v837 = vmul.f32 %v757, %v820
        %v838 = vmul.f32 %v758, %v822
        %v839 = vsub.f32 1.0, %v823
        %v840 = vsub.f32 1.0, %v824
        %v841 = vsub.f32 1.0, %v825
        %v842 = vsub.f32 1.0, %v826
        %v843 = vsub.f32 1.0, %v827
        %v844 = vsub.f32 1.0, %v828
        %v845 = vsub.f32 1.0, %v829
        %v846 = vsub.f32 1.0, %v830
        %v847 = vsub.f32 1.0, %v831
        %v848 = vsub.f32 1.0, %v832
        %v849 = vsub.f32 1.0, %v833
        %v850 = vsub.f32 1.0, %v834
        %v851 = vsub.f32 1.0, %v835
        %v852 = vsub.f32 1.0, %v836
        %v853 = vsub.f32 1.0, %v837
        %v854 = vsub.f32 1.0, %v838
        %v855 = vmul.f32 %v535, %v839
        %v856 = vmul.f32 %v536, %v840
        %v857 = vmul.f32 %v537, %v841
        %v858 = vmul.f32 %v538, %v842
        %v859 = vmul.f32 %v539, %v843
        %v860 = vmul.f32 %v540, %v844
        %v861 = vmul.f32 %v541, %v845
        %v862 = vmul.f32 %v542, %v846
        %v863 = vmul.f32 %v543, %v847
        %v864 = vmul.f32 %v544, %v848
        %v865 = vmul.f32 %v545, %v849
        %v866 = vmul.f32 %v546, %v850
        %v867 = vmul.f32 %v547, %v851
        %v868 = vmul.f32 %v548, %v852
        %v869 = vmul.f32 %v549, %v853
        %v870 = vmul.f32 %v550, %v854
        %v871 = vadd.f32 %v855, 1.0
        %v872 = vadd.f32 %v856, 1.0
        %v873 = vadd.f32 %v857, 1.0
        %v874 = vadd.f32 %v858, 1.0
        %v875 = vadd.f32 %v859, 1.0
        %v876 = vadd.f32 %v860, 1.0
        %v877 = vadd.f32 %v861, 1.0
        %v878 = vadd.f32 %v862, 1.0
        %v879 = vadd.f32 %v863, 1.0
        %v880 = vadd.f32 %v864, 1.0
        %v881 = vadd.f32 %v865, 1.0
        %v882 = vadd.f32 %v866, 1.0
        %v883 = vadd.f32 %v867, 1.0
        %v884 = vadd.f32 %v868, 1.0
        %v885 = vadd.f32 %v869, 1.0
        %v886 = vadd.f32 %v870, 1.0
        %v887 = vmul.f32 %v487, %v871
        %v888 = vmul.f32 %v488, %v872
        %v889 = vmul.f32 %v489, %v873
        %v890 = vmul.f32 %v490, %v874
        %v891 = vmul.f32 %v491, %v875
        %v892 = vmul.f32 %v492, %v876
        %v893 = vmul.f32 %v493, %v877
        %v894 = vmul.f32 %v494, %v878
        %v895 = vmul.f32 %v495, %v879
        %v896 = vmul.f32 %v496, %v880
        %v897 = vmul.f32 %v497, %v881
        %v898 = vmul.f32 %v498, %v882
        %v899 = vmul.f32 %v499, %v883
        %v900 = vmul.f32 %v500, %v884
        %v901 = vmul.f32 %v501, %v885
        %v902 = vmul.f32 %v502, %v886
        %v903 = vpack.c.bf16 %v889, %v887
        %v904 = vpack.c.bf16 %v890, %v888
        %v905 = vpack.c.bf16 %v893, %v891
        %v906 = vpack.c.bf16 %v894, %v892
        %v907 = vpack.c.bf16 %v897, %v895
        %v908 = vpack.c.bf16 %v898, %v896
        %v909 = vpack.c.bf16 %v901, %v899
        %v910 = vpack.c.bf16 %v902, %v900
        %v911 = vld [vmem:[#allocation8] sm:$0xf]
        %v912 = vld [vmem:[#allocation8 + $0x4] sm:$0xf]
        %v913 = vld [vmem:[#allocation8 + $0x8] sm:$0xf]
        %v914 = vld [vmem:[#allocation8 + $0xc] sm:$0xf]
        %v915 = vld [vmem:[#allocation8 + $0x10] sm:$0xf]
        %v916 = vld [vmem:[#allocation8 + $0x14] sm:$0xf]
        %v917 = vld [vmem:[#allocation8 + $0x18] sm:$0xf]
        %v918 = vld [vmem:[#allocation8 + $0x1c] sm:$0xf]
        %v919 = vld [vmem:[#allocation8 + $0x20] sm:$0xf]
        %v920 = vld [vmem:[#allocation8 + $0x24] sm:$0xf]
        %v921 = vld [vmem:[#allocation8 + $0x28] sm:$0xf]
        %v922 = vld [vmem:[#allocation8 + $0x2c] sm:$0xf]
        %v923 = vld [vmem:[#allocation8 + $0x30] sm:$0xf]
        %v924 = vld [vmem:[#allocation8 + $0x34] sm:$0xf]
        %v925 = vld [vmem:[#allocation8 + $0x38] sm:$0xf]
        %v926 = vld [vmem:[#allocation8 + $0x3c] sm:$0xf]
        %v927 = vld [vmem:[#allocation8 + $0x40] sm:$0xf]
        %v928 = vld [vmem:[#allocation8 + $0x44] sm:$0xf]
        %v929 = vld [vmem:[#allocation8 + $0x48] sm:$0xf]
        %v930 = vld [vmem:[#allocation8 + $0x4c] sm:$0xf]
        %v931 = vld [vmem:[#allocation8 + $0x50] sm:$0xf]
        %v932 = vld [vmem:[#allocation8 + $0x54] sm:$0xf]
        %v933 = vld [vmem:[#allocation8 + $0x58] sm:$0xf]
        %v934 = vld [vmem:[#allocation8 + $0x5c] sm:$0xf]
        %v935 = vld [vmem:[#allocation8 + $0x60] sm:$0xf]
        %v936 = vld [vmem:[#allocation8 + $0x64] sm:$0xf]
        %v937 = vld [vmem:[#allocation8 + $0x68] sm:$0xf]
        %v938 = vld [vmem:[#allocation8 + $0x6c] sm:$0xf]
        %v939 = vld [vmem:[#allocation8 + $0x70] sm:$0xf]
        %v940 = vld [vmem:[#allocation8 + $0x74] sm:$0xf]
        %v941 = vld [vmem:[#allocation8 + $0x78] sm:$0xf]
        %v942 = vld [vmem:[#allocation8 + $0x7c] sm:$0xf]
        %v943 = vld [vmem:[%s4] sm:$0x1]
        %v945 = vperm.slane %v943, 0
        %v979 = vunpack.c.l.b16 %v911
        %v980 = vunpack.c.l.b16 %v912
        %v981 = vunpack.c.l.b16 %v913
        %v982 = vunpack.c.l.b16 %v914
        %v983 = vunpack.c.l.b16 %v915
        %v984 = vunpack.c.l.b16 %v916
        %v985 = vunpack.c.l.b16 %v917
        %v986 = vunpack.c.l.b16 %v918
        %v987 = vunpack.c.l.b16 %v919
        %v988 = vunpack.c.l.b16 %v920
        %v989 = vunpack.c.l.b16 %v921
        %v990 = vunpack.c.l.b16 %v922
        %v991 = vunpack.c.l.b16 %v923
        %v992 = vunpack.c.l.b16 %v924
        %v993 = vunpack.c.l.b16 %v925
        %v994 = vunpack.c.l.b16 %v926
        %v995 = vunpack.c.l.b16 %v927
        %v996 = vunpack.c.l.b16 %v928
        %v997 = vunpack.c.l.b16 %v929
        %v998 = vunpack.c.l.b16 %v930
        %v999 = vunpack.c.l.b16 %v931
        %v1000 = vunpack.c.l.b16 %v932
        %v1001 = vunpack.c.l.b16 %v933
        %v1002 = vunpack.c.l.b16 %v934
        %v1003 = vunpack.c.l.b16 %v935
        %v1004 = vunpack.c.l.b16 %v936
        %v1005 = vunpack.c.l.b16 %v937
        %v1006 = vunpack.c.l.b16 %v938
        %v1007 = vunpack.c.l.b16 %v939
        %v1008 = vunpack.c.l.b16 %v940
        %v1009 = vunpack.c.l.b16 %v941
        %v1010 = vunpack.c.l.b16 %v942
        %v1011 = vpack.c.b16 %v980, %v979
        %v1012 = vpack.c.b16 %v982, %v981
        %v1013 = vpack.c.b16 %v984, %v983
        %v1014 = vpack.c.b16 %v986, %v985
        %v1015 = vpack.c.b16 %v988, %v987
        %v1016 = vpack.c.b16 %v990, %v989
        %v1017 = vpack.c.b16 %v992, %v991
        %v1018 = vpack.c.b16 %v994, %v993
        %v1019 = vpack.c.b16 %v996, %v995
        %v1020 = vpack.c.b16 %v998, %v997
        %v1021 = vpack.c.b16 %v1000, %v999
        %v1022 = vpack.c.b16 %v1002, %v1001
        %v1023 = vpack.c.b16 %v1004, %v1003
        %v1024 = vpack.c.b16 %v1006, %v1005
        %v1025 = vpack.c.b16 %v1008, %v1007
        %v1026 = vpack.c.b16 %v1010, %v1009
        %1043 = vmatpush.bf16.msra.mxu0 %v1018
        %1044 = vmatpush.bf16.msra.mxu0 %v1017
        %1045 = vmatpush.bf16.msra.mxu0 %v1016
        %1046 = vmatpush.bf16.msra.mxu0 %v1015
        %1047 = vmatpush.bf16.msra.mxu0 %v1014
        %1048 = vmatpush.bf16.msra.mxu0 %v1013
        %1049 = vmatpush.bf16.msra.mxu0 %v1012
        %1050 = vmatpush.bf16.msra.mxu0 %v1011
        %1051 = vmatmul.bf16.gmra.mxu0 %v903
        %v1052 = vpop.f32.mrf.mxu0
        %v1053 = vadd.f32 %v945, %v1052
        %v1054 = vpop.f32.mrf.mxu0
        %v1055 = vadd.f32 %v945, %v1054
        %1056 = vmatmul.bf16.gmra.mxu0 %v905
        %v1057 = vpop.f32.mrf.mxu0
        %v1058 = vadd.f32 %v945, %v1057
        %v1059 = vpop.f32.mrf.mxu0
        %v1060 = vadd.f32 %v945, %v1059
        %1061 = vmatmul.bf16.gmra.mxu0 %v907
        %v1062 = vpop.f32.mrf.mxu0
        %v1063 = vadd.f32 %v945, %v1062
        %v1064 = vpop.f32.mrf.mxu0
        %v1065 = vadd.f32 %v945, %v1064
        %1066 = vmatmul.bf16.gmra.mxu0 %v909
        %v1067 = vpop.f32.mrf.mxu0
        %v1068 = vadd.f32 %v945, %v1067
        %v1069 = vpop.f32.mrf.mxu0
        %v1070 = vadd.f32 %v945, %v1069
        %1071 = vdwg.mxu0
        %1072 = vmatpush.bf16.msra.mxu0 %v1026
        %1073 = vmatpush.bf16.msra.mxu0 %v1025
        %1074 = vmatpush.bf16.msra.mxu0 %v1024
        %1075 = vmatpush.bf16.msra.mxu0 %v1023
        %1076 = vmatpush.bf16.msra.mxu0 %v1022
        %1077 = vmatpush.bf16.msra.mxu0 %v1021
        %1078 = vmatpush.bf16.msra.mxu0 %v1020
        %1079 = vmatpush.bf16.msra.mxu0 %v1019
        %1080 = vmatmul.bf16.gmra.mxu0 %v904
        %v1081 = vpop.f32.mrf.mxu0
        %v1082 = vadd.f32 %v1053, %v1081
        %v1083 = vpop.f32.mrf.mxu0
        %v1084 = vadd.f32 %v1055, %v1083
        %1085 = vmatmul.bf16.gmra.mxu0 %v906
        %v1086 = vpop.f32.mrf.mxu0
        %v1087 = vadd.f32 %v1058, %v1086
        %v1088 = vpop.f32.mrf.mxu0
        %v1089 = vadd.f32 %v1060, %v1088
        %1090 = vmatmul.bf16.gmra.mxu0 %v908
        %v1091 = vpop.f32.mrf.mxu0
        %v1092 = vadd.f32 %v1063, %v1091
        %v1093 = vpop.f32.mrf.mxu0
        %v1094 = vadd.f32 %v1065, %v1093
        %1095 = vmatmul.bf16.gmra.mxu0 %v910
        %v1096 = vpop.f32.mrf.mxu0
        %v1097 = vadd.f32 %v1068, %v1096
        %v1098 = vpop.f32.mrf.mxu0
        %v1099 = vadd.f32 %v1070, %v1098
        %1100 = vdwg.mxu0
        %1101 = vst [vmem:[%s292] sm:$0xff] %v1082
        %1102 = vst [vmem:[%s292 + $0x8] sm:$0xff] %v1084
        %1103 = vst [vmem:[%s292 + $0x10] sm:$0xff] %v1087
        %1104 = vst [vmem:[%s292 + $0x18] sm:$0xff] %v1089
        %1105 = vst [vmem:[%s292 + $0x20] sm:$0xff] %v1092
        %1106 = vst [vmem:[%s292 + $0x28] sm:$0xff] %v1094
        %1107 = vst [vmem:[%s292 + $0x30] sm:$0xff] %v1097
        %1108 = vst [vmem:[%s292 + $0x38] sm:$0xff] %v1099
        %s1109 = sand.u32 %s142, 1
        %s1110 = scalar_lea.sflag [#allocation4], %s1109
        %s1111 = sand.u32 %s142, 1
        %s1112 = smul.addr %s1111, 64
        %s1113 = scalar_lea.vmem [#allocation10], %s1112
        // Predicated region
        $region57: #{tpu_custom_call.1} parent=39 // pred_check
          %p1114 = pneg %p152
        $region58: #{tpu_custom_call.1} parent=39 // pred_check_branch
          %1116 = sbr.rel (%p1114) target = $region60
        $region59: #{tpu_custom_call.1} parent=39 // pred_region
          %s1117 = smul.u32 8, %s24
          %1119 = vsyncadd %s1110, 0
          %s1120 = smul.addr %s1117, 8
          %s1121 = scalar_lea.hbm %s5, %s1120
          %s1122 = sshll.u32 %s1113, 4
          %s1123 = int_to_ptr.vmem [resolvable:$true] %s1122
          %s1124 = sshll.u32 %s1121, 4
          %s1125 = int_to_ptr.hbm [resolvable:$true] %s1124
          %1130 = dma.vmem_to_hbm [thread:$0]  %s1123, 1024, %s1125, %s1110, 128, 128, 8
        $region60: #{tpu_custom_call.1} parent=39 // pred_fallthru
          _
      $region40: #{tpu_custom_call.1} parent=5 // pred_fallthru
        _
      %p1131 = scmp.le.s32.totalorder 2, %s19
      // Predicated region
      $region61: #{tpu_custom_call.1} parent=5 // pred_check
        %p1132 = pneg %p1131
      $region62: #{tpu_custom_call.1} parent=5 // pred_check_branch
        %1134 = sbr.rel (%p1132) target = $region64
      $region63: #{tpu_custom_call.1} parent=5 // pred_region
        %s1135 = ssub.s32 %s19, 2
        // Predicated region
        $region65: #{tpu_custom_call.1} parent=63 // pred_check
          %p1136 = pneg %p158
        $region66: #{tpu_custom_call.1} parent=63 // pred_check_branch
          %1138 = sbr.rel (%p1136) target = $region68
        $region67: #{tpu_custom_call.1} parent=63 // pred_region
          %s1139 = sand.u32 %s143, 1
          %s1140 = scalar_lea.sflag [#allocation4], %s1139
          %s1141 = sand.u32 %s143, 1
          %s1142 = smul.addr %s1141, 64
          %s1143 = scalar_lea.vmem [#allocation10], %s1142
          %1145 = dma.done %s1140, 1024
        $region68: #{tpu_custom_call.1} parent=63 // pred_fallthru
          _
      $region64: #{tpu_custom_call.1} parent=5 // pred_fallthru
        _
    $region6: #{tpu_custom_call.1} parent=1 // loop_footer
      %s23 = sadd.s32 1, %s19
    $region7: #{tpu_custom_call.1} parent=1 // loop_footer_branch
      %18 = sbr.rel target = $region3
    $region8: #{tpu_custom_call.1} parent=1 // loop_exit
      _
    %1146 = vsyncpa [#allocation3], 1
    %s1147 = scalar_lea.sflag [#allocation3], 1
    %1148 = vsyncpa %s1147, 1
    %1149 = vsyncpa [#allocation6], 1
    %1150 = vsyncpa [#allocation9], 1
    %1151 = vsyncpa [#allocation4], 1
    %s1152 = scalar_lea.sflag [#allocation4], 1
    %1153 = vsyncpa %s1152, 1

</llo_original>
